<compile_context>
chip_gen: v6e
topology: v6e:2x2x1
jax: 0.10.0
libtpu: 0.0.40
codegen_flags: <defaults>
</compile_context>

<pallas_src>
import math

import jax
import jax.numpy as jnp
from jax.experimental import pallas as pl
from jax.experimental.pallas import tpu as pltpu

# ------------------------- model config (small) -------------------------
VOCAB = 128
MAX_POS = 16
HIDDEN = 32
NUM_HEADS = 2
HEAD_DIM = HIDDEN // NUM_HEADS
INTERMEDIATE = 64
NUM_LAYERS = 2
NUM_CLASSES = 3
BATCH = 2
SEQ = 8
LN_EPS = 1e-12
ATTN_SCALE = 1.0 / math.sqrt(HEAD_DIM)

STRIPE = 128                          # one 128-lane stripe per head per Q/K/V
QKV_LANES = 3 * NUM_HEADS * STRIPE    # lane width of the packed QKV projection
OUT_PAD = 128                         # lane-dense classifier output width


# --------------------------- shared helpers ------------------------------
def _gelu(x):
    # TODO(synk): HF BERT uses exact erf-GELU; tanh approximation differs only
    # at tolerance level (reference below uses the same approximation).
    return 0.5 * x * (1.0 + jnp.tanh(0.7978845608028654 * (x + 0.044715 * x * x * x)))


def _layernorm(x, g, b):
    mean = jnp.mean(x, axis=-1, keepdims=True)
    xc = x - mean
    var = jnp.mean(xc * xc, axis=-1, keepdims=True)
    return xc * jax.lax.rsqrt(var + LN_EPS) * g + b


# ------------------------------ fused kernel -----------------------------
def _bert_layer_kernel(
    emb_ref, mask_ref,
    emb_ln_g_ref, emb_ln_b_ref,
    qkv_w_ref, qkv_b_ref,
    o_w_ref, o_b_ref,
    ln1_g_ref, ln1_b_ref,
    i_w_ref, i_b_ref,
    f_w_ref, f_b_ref,
    ln2_g_ref, ln2_b_ref,
    fc_w_ref, fc_b_ref,
    out_ref,
    h_sc,
):
    f32 = jnp.float32
    bf16 = jnp.bfloat16
    layer = pl.program_id(1)

    # Embedding LayerNorm only on the first layer step; the residual stream
    # lives in VMEM scratch across the "arbitrary" layer axis.
    @pl.when(layer == 0)
    def _():
        h_sc[...] = _layernorm(emb_ref[...], emb_ln_g_ref[...], emb_ln_b_ref[...])

    h = h_sc[...]                                                      # (S, H) f32

    # Fused, lane-aligned QKV projection: heads sit on separate 128-lane
    # stripes; the attention scale is pre-folded into the Q stripes.
    qkv = jnp.dot(h.astype(bf16), qkv_w_ref[...],
                  preferred_element_type=f32) + qkv_b_ref[...]         # (S, 3*NH*128)

    bias = mask_ref[...]                                               # (1, S) -> (S, S)
    o_w = o_w_ref[...]                                                 # (NH*128, H) bf16

    attn = None
    for hh in range(NUM_HEADS):
        q0 = (0 * NUM_HEADS + hh) * STRIPE
        k0 = (1 * NUM_HEADS + hh) * STRIPE
        v0 = (2 * NUM_HEADS + hh) * STRIPE
        q_h = qkv[:, q0:q0 + STRIPE]                                   # (S, 128), vreg-aligned
        k_h = qkv[:, k0:k0 + STRIPE]
        v_h = qkv[:, v0:v0 + STRIPE]

        # Scores: contraction over the zero-padded head dim (padding is inert).
        s = jax.lax.dot_general(
            q_h.astype(bf16), k_h.astype(bf16),
            (((1,), (1,)), ((), ())),
            preferred_element_type=f32) + bias                         # (S, S) f32
        s = s - jnp.max(s, axis=-1, keepdims=True)
        p = jnp.exp(s)
        p = p * pl.reciprocal(jnp.sum(p, axis=-1, keepdims=True), approx=True)

        ctx = jnp.dot(p.astype(bf16), v_h.astype(bf16),
                      preferred_element_type=f32)                      # (S, 128)
        contrib = jnp.dot(ctx.astype(bf16),
                          o_w[hh * STRIPE:(hh + 1) * STRIPE, :],
                          preferred_element_type=f32)                  # (S, H)
        attn = contrib if attn is None else attn + contrib
    attn = attn + o_b_ref[...]

    h1 = _layernorm(h + attn, ln1_g_ref[...], ln1_b_ref[...])

    ffn = _gelu(jnp.dot(h1.astype(bf16), i_w_ref[...],
                        preferred_element_type=f32) + i_b_ref[...])
    ffn = jnp.dot(ffn.astype(bf16), f_w_ref[...],
                  preferred_element_type=f32) + f_b_ref[...]
    h_new = _layernorm(h1 + ffn, ln2_g_ref[...], ln2_b_ref[...])
    h_sc[...] = h_new

    # CLS pooling + classifier head on the last layer step (lane-dense 128-wide
    # logits tile; the wrapper slices the real NUM_CLASSES columns).
    @pl.when(layer == pl.num_programs(1) - 1)
    def _():
        cls = h_new[0:1, :]                                            # (1, H)
        # TODO(synk): nn.Dropout(0.3) is identity in eval/inference mode; skipped.
        logits = jnp.dot(cls.astype(bf16), fc_w_ref[...],
                         preferred_element_type=f32) + fc_b_ref[...]   # (1, 128)
        out_ref[...] = logits


# ------------------------------- wrapper ----------------------------------
def bert_sentiment_forward(kparams, input_ids, attention_mask):
    B, S = input_ids.shape

    # Embedding gathers stay in glue JAX (data-dependent row gather).
    # TODO(synk): could be pulled in-kernel via scalar-prefetched ids + a
    # pl.Element row-gather BlockSpec on word_emb.
    tok = jnp.take(kparams["word_emb"], input_ids, axis=0)             # (B, S, H)
    pos = kparams["pos_emb"][:S][None, :, :]
    typ = kparams["type_emb"][0][None, None, :]
    emb = (tok + pos + typ).astype(jnp.float32)                        # (B, S, H)

    # Additive attention-mask bias, built once (hoisted out of the kernel loops).
    mask_bias = ((1.0 - attention_mask.astype(jnp.float32)) * -1e9).reshape(B, 1, S)

    def layer_spec(tail):
        # Per-layer weight: leading layer axis squeezed, block-indexed by l.
        return pl.BlockSpec((None,) + tail, lambda b, l: (l,) + (0,) * len(tail))

    def fixed_spec(shape):
        return pl.BlockSpec(shape, lambda b, l: (0,) * len(shape))

    grid_spec = pltpu.PrefetchScalarGridSpec(
        num_scalar_prefetch=0,
        grid=(B, NUM_LAYERS),
        in_specs=[
            pl.BlockSpec((None, S, HIDDEN), lambda b, l: (b, 0, 0)),   # emb
            pl.BlockSpec((None, 1, S), lambda b, l: (b, 0, 0)),        # mask bias
            fixed_spec((1, HIDDEN)), fixed_spec((1, HIDDEN)),          # emb LN g/b
            layer_spec((HIDDEN, QKV_LANES)), layer_spec((1, QKV_LANES)),       # QKV w/b
            layer_spec((NUM_HEADS * STRIPE, HIDDEN)), layer_spec((1, HIDDEN)),  # out proj
            layer_spec((1, HIDDEN)), layer_spec((1, HIDDEN)),          # LN1 g/b
            layer_spec((HIDDEN, INTERMEDIATE)), layer_spec((1, INTERMEDIATE)),  # FFN in
            layer_spec((INTERMEDIATE, HIDDEN)), layer_spec((1, HIDDEN)),        # FFN out
            layer_spec((1, HIDDEN)), layer_spec((1, HIDDEN)),          # LN2 g/b
            fixed_spec((HIDDEN, OUT_PAD)), fixed_spec((1, OUT_PAD)),   # classifier w/b
        ],
        out_specs=pl.BlockSpec((None, 1, OUT_PAD), lambda b, l: (b, 0, 0)),
        scratch_shapes=[pltpu.VMEM((SEQ, HIDDEN), jnp.float32)],       # residual stream
    )

    out = pl.pallas_call(
        _bert_layer_kernel,
        out_shape=jax.ShapeDtypeStruct((B, 1, OUT_PAD), jnp.float32),
        grid_spec=grid_spec,
        compiler_params=pltpu.CompilerParams(
            dimension_semantics=("parallel", "arbitrary"),
            vmem_limit_bytes=32 * 1024 * 1024,
        ),
    )(
        emb, mask_bias,
        kparams["emb_ln_g"], kparams["emb_ln_b"],
        kparams["qkv_w"], kparams["qkv_b"],
        kparams["o_w"], kparams["o_b"],
        kparams["ln1_g"], kparams["ln1_b"],
        kparams["i_w"], kparams["i_b"],
        kparams["f_w"], kparams["f_b"],
        kparams["ln2_g"], kparams["ln2_b"],
        kparams["fc_w"], kparams["fc_b"],
    )
    return out.reshape(B, OUT_PAD)[:, :NUM_CLASSES]


# --------------------------- parameters -----------------------------------
def init_params(key):
    ks = iter(jax.random.split(key, 32))

    def rnd(shape, scale=0.02):
        return jax.random.normal(next(ks), shape, jnp.float32) * scale

    L, H, I, C = NUM_LAYERS, HIDDEN, INTERMEDIATE, NUM_CLASSES
    return {
        "word_emb": rnd((VOCAB, H)),
        "pos_emb": rnd((MAX_POS, H)),
        "type_emb": rnd((2, H)),
        "emb_ln_g": 1.0 + rnd((1, H), 0.1), "emb_ln_b": rnd((1, H), 0.05),
        "q_w": rnd((L, H, H)), "q_b": rnd((L, 1, H)),
        "k_w": rnd((L, H, H)), "k_b": rnd((L, 1, H)),
        "v_w": rnd((L, H, H)), "v_b": rnd((L, 1, H)),
        "o_w": rnd((L, H, H)), "o_b": rnd((L, 1, H)),
        "ln1_g": 1.0 + rnd((L, 1, H), 0.1), "ln1_b": rnd((L, 1, H), 0.05),
        "i_w": rnd((L, H, I)), "i_b": rnd((L, 1, I)),
        "f_w": rnd((L, I, H)), "f_b": rnd((L, 1, H)),
        "ln2_g": 1.0 + rnd((L, 1, H), 0.1), "ln2_b": rnd((L, 1, H), 0.05),
        "fc_w": rnd((H, C)), "fc_b": rnd((1, C)),
    }


def pack_params(p):
    """Pack logical f32 params into the lane-aligned bf16 kernel layout."""
    bf16 = jnp.bfloat16
    L, H, NH, DH = NUM_LAYERS, HIDDEN, NUM_HEADS, HEAD_DIM

    qkv_w = jnp.zeros((L, H, QKV_LANES), jnp.float32)
    qkv_b = jnp.zeros((L, 1, QKV_LANES), jnp.float32)
    parts = [(p["q_w"], p["q_b"], ATTN_SCALE),   # attention scale folded into Q
             (p["k_w"], p["k_b"], 1.0),
             (p["v_w"], p["v_b"], 1.0)]
    for m, (w, b, sc) in enumerate(parts):
        for hh in range(NH):
            c0 = (m * NH + hh) * STRIPE
            qkv_w = qkv_w.at[:, :, c0:c0 + DH].set(w[:, :, hh * DH:(hh + 1) * DH] * sc)
            qkv_b = qkv_b.at[:, :, c0:c0 + DH].set(b[:, :, hh * DH:(hh + 1) * DH] * sc)

    o_w = jnp.zeros((L, NH * STRIPE, H), jnp.float32)
    for hh in range(NH):
        o_w = o_w.at[:, hh * STRIPE:hh * STRIPE + DH, :].set(
            p["o_w"][:, hh * DH:(hh + 1) * DH, :])

    fc_w = jnp.zeros((H, OUT_PAD), jnp.float32).at[:, :NUM_CLASSES].set(p["fc_w"])
    fc_b = jnp.zeros((1, OUT_PAD), jnp.float32).at[:, :NUM_CLASSES].set(p["fc_b"])

    return {
        "word_emb": p["word_emb"], "pos_emb": p["pos_emb"], "type_emb": p["type_emb"],
        "emb_ln_g": p["emb_ln_g"], "emb_ln_b": p["emb_ln_b"],
        "qkv_w": qkv_w.astype(bf16), "qkv_b": qkv_b,
        "o_w": o_w.astype(bf16), "o_b": p["o_b"],
        "ln1_g": p["ln1_g"], "ln1_b": p["ln1_b"],
        "i_w": p["i_w"].astype(bf16), "i_b": p["i_b"],
        "f_w": p["f_w"].astype(bf16), "f_b": p["f_b"],
        "ln2_g": p["ln2_g"], "ln2_b": p["ln2_b"],
        "fc_w": fc_w.astype(bf16), "fc_b": fc_b,
    }


# ---------------------------- pure-JAX reference ---------------------------
def reference_forward(p, input_ids, attention_mask):
    B, S = input_ids.shape
    H, NH, DH = HIDDEN, NUM_HEADS, HEAD_DIM
    tok = jnp.take(p["word_emb"], input_ids, axis=0)
    emb = tok + p["pos_emb"][:S][None, :, :] + p["type_emb"][0][None, None, :]
    h = _layernorm(emb, p["emb_ln_g"], p["emb_ln_b"])                  # (B, S, H)
    bias = ((1.0 - attention_mask.astype(jnp.float32)) * -1e9)[:, None, None, :]
    for l in range(NUM_LAYERS):
        q = h @ p["q_w"][l] + p["q_b"][l]
        k = h @ p["k_w"][l] + p["k_b"][l]
        v = h @ p["v_w"][l] + p["v_b"][l]
        q4 = q.reshape(B, S, NH, DH).transpose(0, 2, 1, 3)
        k4 = k.reshape(B, S, NH, DH).transpose(0, 2, 1, 3)
        v4 = v.reshape(B, S, NH, DH).transpose(0, 2, 1, 3)
        s = jnp.einsum("bhqd,bhkd->bhqk", q4, k4) * ATTN_SCALE + bias
        pr = jax.nn.softmax(s, axis=-1)
        ctx = jnp.einsum("bhqk,bhkd->bhqd", pr, v4)
        ctx = ctx.transpose(0, 2, 1, 3).reshape(B, S, H)
        attn = ctx @ p["o_w"][l] + p["o_b"][l]
        h1 = _layernorm(h + attn, p["ln1_g"][l], p["ln1_b"][l])
        ffn = _gelu(h1 @ p["i_w"][l] + p["i_b"][l]) @ p["f_w"][l] + p["f_b"][l]
        h = _layernorm(h1 + ffn, p["ln2_g"][l], p["ln2_b"][l])
    cls = h[:, 0, :]
    return cls @ p["fc_w"] + p["fc_b"]


# -------------------------------- main -------------------------------------
if __name__ == "__main__":
    key = jax.random.PRNGKey(0)
    k_param, k_ids = jax.random.split(key)

    params = init_params(k_param)
    kernel_params = pack_params(params)

    input_ids = jax.random.randint(k_ids, (BATCH, SEQ), 0, VOCAB, dtype=jnp.int32)
    attention_mask = jnp.array(
        [[1, 1, 1, 1, 1, 1, 1, 1],
         [1, 1, 1, 1, 1, 1, 0, 0]], dtype=jnp.int32)

    logits = jax.jit(bert_sentiment_forward)(kernel_params, input_ids, attention_mask)
    jax.block_until_ready(logits)
    assert logits.shape == (BATCH, NUM_CLASSES)

    ref = reference_forward(params, input_ids, attention_mask)
    max_err = float(jnp.max(jnp.abs(logits - ref)))
    assert max_err < 3e-2, f"kernel vs reference max abs err {max_err}"

    print("KERNEL_OK")
</pallas_src>

<mosaic_0001>
module attributes {stable_mosaic.version = 11 : i64} {
  func.func @_bert_layer_kernel(%arg0: i32, %arg1: i32, %arg2: memref<1x8x32xf32, #tpu.memory_space<vmem>>, %arg3: memref<1x1x8xf32, #tpu.memory_space<vmem>>, %arg4: memref<1x32xf32, #tpu.memory_space<vmem>>, %arg5: memref<1x32xf32, #tpu.memory_space<vmem>>, %arg6: memref<1x32x768xbf16, #tpu.memory_space<vmem>>, %arg7: memref<1x1x768xf32, #tpu.memory_space<vmem>>, %arg8: memref<1x256x32xbf16, #tpu.memory_space<vmem>>, %arg9: memref<1x1x32xf32, #tpu.memory_space<vmem>>, %arg10: memref<1x1x32xf32, #tpu.memory_space<vmem>>, %arg11: memref<1x1x32xf32, #tpu.memory_space<vmem>>, %arg12: memref<1x32x64xbf16, #tpu.memory_space<vmem>>, %arg13: memref<1x1x64xf32, #tpu.memory_space<vmem>>, %arg14: memref<1x64x32xbf16, #tpu.memory_space<vmem>>, %arg15: memref<1x1x32xf32, #tpu.memory_space<vmem>>, %arg16: memref<1x1x32xf32, #tpu.memory_space<vmem>>, %arg17: memref<1x1x32xf32, #tpu.memory_space<vmem>>, %arg18: memref<32x128xbf16, #tpu.memory_space<vmem>>, %arg19: memref<1x128xf32, #tpu.memory_space<vmem>>, %arg20: memref<1x1x128xf32, #tpu.memory_space<vmem>>, %arg21: memref<8x32xf32, #tpu.memory_space<vmem>>) attributes {dimension_semantics = [#tpu.dimension_semantics<parallel>, #tpu.dimension_semantics<arbitrary>], iteration_bounds = array<i64: 2, 2>, scalar_prefetch = 0 : i64, scratch_operands = 1 : i64, tpu.core_type = #tpu.core_type<tc>, window_params = [{transform_indices = @transform_0, window_bounds = array<i64: 1, 8, 32>}, {transform_indices = @transform_1, window_bounds = array<i64: 1, 1, 8>}, {pipeline_mode = #tpu.pipeline_mode<synchronous>, transform_indices = @transform_2, window_bounds = array<i64: 1, 32>}, {pipeline_mode = #tpu.pipeline_mode<synchronous>, transform_indices = @transform_3, window_bounds = array<i64: 1, 32>}, {transform_indices = @transform_4, window_bounds = array<i64: 1, 32, 768>}, {transform_indices = @transform_5, window_bounds = array<i64: 1, 1, 768>}, {transform_indices = @transform_6, window_bounds = array<i64: 1, 256, 32>}, {transform_indices = @transform_7, window_bounds = array<i64: 1, 1, 32>}, {transform_indices = @transform_8, window_bounds = array<i64: 1, 1, 32>}, {transform_indices = @transform_9, window_bounds = array<i64: 1, 1, 32>}, {transform_indices = @transform_10, window_bounds = array<i64: 1, 32, 64>}, {transform_indices = @transform_11, window_bounds = array<i64: 1, 1, 64>}, {transform_indices = @transform_12, window_bounds = array<i64: 1, 64, 32>}, {transform_indices = @transform_13, window_bounds = array<i64: 1, 1, 32>}, {transform_indices = @transform_14, window_bounds = array<i64: 1, 1, 32>}, {transform_indices = @transform_15, window_bounds = array<i64: 1, 1, 32>}, {pipeline_mode = #tpu.pipeline_mode<synchronous>, transform_indices = @transform_16, window_bounds = array<i64: 32, 128>}, {pipeline_mode = #tpu.pipeline_mode<synchronous>, transform_indices = @transform_17, window_bounds = array<i64: 1, 128>}, {transform_indices = @transform_18, window_bounds = array<i64: 1, 1, 128>}]} {
    %c0_i32 = arith.constant 0 : i32
    %0 = arith.cmpi eq, %arg1, %c0_i32 : i32
    %1 = arith.extui %0 : i1 to i32
    %c0_i32_0 = arith.constant 0 : i32
    %2 = arith.cmpi ne, %1, %c0_i32_0 : i32
    scf.if %2 {
      %c0_70 = arith.constant 0 : index
      %c0_71 = arith.constant 0 : index
      %c0_72 = arith.constant 0 : index
      %152 = vector.load %arg2[%c0_70, %c0_71, %c0_72] : memref<1x8x32xf32, #tpu.memory_space<vmem>>, vector<1x8x32xf32>
      %153 = vector.shape_cast %152 : vector<1x8x32xf32> to vector<8x32xf32>
      %c0_73 = arith.constant 0 : index
      %c0_74 = arith.constant 0 : index
      %154 = vector.load %arg4[%c0_73, %c0_74] : memref<1x32xf32, #tpu.memory_space<vmem>>, vector<1x32xf32>
      %c0_75 = arith.constant 0 : index
      %c0_76 = arith.constant 0 : index
      %155 = vector.load %arg5[%c0_75, %c0_76] : memref<1x32xf32, #tpu.memory_space<vmem>>, vector<1x32xf32>
      %cst_77 = arith.constant dense<0.000000e+00> : vector<8xf32>
      %156 = vector.multi_reduction <add>, %153, %cst_77 [1] : vector<8x32xf32> to vector<8xf32>
      %157 = vector.shape_cast %156 : vector<8xf32> to vector<8x1xf32>
      %cst_78 = arith.constant 3.200000e+01 : f32
      %158 = vector.broadcast %cst_78 : f32 to vector<8x1xf32>
      %159 = arith.divf %157, %158 : vector<8x1xf32>
      %160 = vector.broadcast %159 : vector<8x1xf32> to vector<8x32xf32>
      %161 = arith.subf %153, %160 : vector<8x32xf32>
      %162 = arith.mulf %161, %161 : vector<8x32xf32>
      %cst_79 = arith.constant dense<0.000000e+00> : vector<8xf32>
      %163 = vector.multi_reduction <add>, %162, %cst_79 [1] : vector<8x32xf32> to vector<8xf32>
      %164 = vector.shape_cast %163 : vector<8xf32> to vector<8x1xf32>
      %cst_80 = arith.constant 3.200000e+01 : f32
      %165 = vector.broadcast %cst_80 : f32 to vector<8x1xf32>
      %166 = arith.divf %164, %165 : vector<8x1xf32>
      %cst_81 = arith.constant 9.99999996E-13 : f32
      %167 = vector.broadcast %cst_81 : f32 to vector<8x1xf32>
      %168 = arith.addf %166, %167 : vector<8x1xf32>
      %169 = math.rsqrt %168 : vector<8x1xf32>
      %170 = vector.broadcast %169 : vector<8x1xf32> to vector<8x32xf32>
      %171 = arith.mulf %161, %170 : vector<8x32xf32>
      %172 = vector.broadcast %154 : vector<1x32xf32> to vector<8x32xf32>
      %173 = arith.mulf %171, %172 : vector<8x32xf32>
      %174 = vector.broadcast %155 : vector<1x32xf32> to vector<8x32xf32>
      %175 = arith.addf %173, %174 : vector<8x32xf32>
      %c0_82 = arith.constant 0 : index
      %c0_83 = arith.constant 0 : index
      %176 = vector.load %arg21[%c0_82, %c0_83] : memref<8x32xf32, #tpu.memory_space<vmem>>, vector<8x32xf32>
      tpu.vector_store %arg21[%c0_82, %c0_83], %175 {strides = array<i32>} : memref<8x32xf32, #tpu.memory_space<vmem>>, vector<8x32xf32>,
    } else {
    }
    %c0 = arith.constant 0 : index
    %c0_1 = arith.constant 0 : index
    %3 = vector.load %arg21[%c0, %c0_1] : memref<8x32xf32, #tpu.memory_space<vmem>>, vector<8x32xf32>
    %4 = arith.truncf %3 : vector<8x32xf32> to vector<8x32xbf16>
    %c0_2 = arith.constant 0 : index
    %c0_3 = arith.constant 0 : index
    %c0_4 = arith.constant 0 : index
    %5 = vector.load %arg6[%c0_2, %c0_3, %c0_4] : memref<1x32x768xbf16, #tpu.memory_space<vmem>>, vector<1x32x768xbf16>
    %6 = vector.shape_cast %5 : vector<1x32x768xbf16> to vector<32x768xbf16>
    %cst = arith.constant dense<0.000000e+00> : vector<8x768xf32>
    %7 = tpu.matmul %4, %6, %cst {dimension_numbers = #tpu.dot_dimension_numbers<[1], [0], [0], [1], [0, 0, 1, 1], [], []>} : vector<8x32xbf16>, vector<32x768xbf16>, vector<8x768xf32> -> vector<8x768xf32>
    %c0_5 = arith.constant 0 : index
    %c0_6 = arith.constant 0 : index
    %c0_7 = arith.constant 0 : index
    %8 = vector.load %arg7[%c0_5, %c0_6, %c0_7] : memref<1x1x768xf32, #tpu.memory_space<vmem>>, vector<1x1x768xf32>
    %9 = vector.shape_cast %8 : vector<1x1x768xf32> to vector<1x768xf32>
    %10 = vector.broadcast %9 : vector<1x768xf32> to vector<8x768xf32>
    %11 = arith.addf %7, %10 : vector<8x768xf32>
    %c0_8 = arith.constant 0 : index
    %c0_9 = arith.constant 0 : index
    %c0_10 = arith.constant 0 : index
    %12 = vector.load %arg3[%c0_8, %c0_9, %c0_10] : memref<1x1x8xf32, #tpu.memory_space<vmem>>, vector<1x1x8xf32>
    %13 = vector.shape_cast %12 : vector<1x1x8xf32> to vector<1x8xf32>
    %c0_11 = arith.constant 0 : index
    %c0_12 = arith.constant 0 : index
    %c0_13 = arith.constant 0 : index
    %14 = vector.load %arg8[%c0_11, %c0_12, %c0_13] : memref<1x256x32xbf16, #tpu.memory_space<vmem>>, vector<1x256x32xbf16>
    %15 = vector.shape_cast %14 : vector<1x256x32xbf16> to vector<256x32xbf16>
    %16 = vector.extract_strided_slice %11 {offsets = [0, 0], sizes = [8, 128], strides = [1, 1]} : vector<8x768xf32> to vector<8x128xf32>
    %17 = vector.extract_strided_slice %11 {offsets = [0, 256], sizes = [8, 128], strides = [1, 1]} : vector<8x768xf32> to vector<8x128xf32>
    %18 = vector.extract_strided_slice %11 {offsets = [0, 512], sizes = [8, 128], strides = [1, 1]} : vector<8x768xf32> to vector<8x128xf32>
    %19 = arith.truncf %16 : vector<8x128xf32> to vector<8x128xbf16>
    %20 = arith.truncf %17 : vector<8x128xf32> to vector<8x128xbf16>
    %cst_14 = arith.constant dense<0.000000e+00> : vector<8x8xf32>
    %21 = tpu.matmul %19, %20, %cst_14 {dimension_numbers = #tpu.dot_dimension_numbers<[1], [1], [0], [0], [0, 0, 1, 0], [], []>} : vector<8x128xbf16>, vector<8x128xbf16>, vector<8x8xf32> -> vector<8x8xf32>
    %22 = vector.broadcast %13 : vector<1x8xf32> to vector<8x8xf32>
    %23 = arith.addf %21, %22 : vector<8x8xf32>
    %cst_15 = arith.constant dense<0xFF800000> : vector<8xf32>
    %24 = vector.multi_reduction <maximumf>, %23, %cst_15 [1] : vector<8x8xf32> to vector<8xf32>
    %25 = vector.shape_cast %24 : vector<8xf32> to vector<8x1xf32>
    %26 = vector.broadcast %25 : vector<8x1xf32> to vector<8x8xf32>
    %27 = arith.subf %23, %26 : vector<8x8xf32>
    %28 = math.exp %27 : vector<8x8xf32>
    %cst_16 = arith.constant dense<0.000000e+00> : vector<8xf32>
    %29 = vector.multi_reduction <add>, %28, %cst_16 [1] : vector<8x8xf32> to vector<8xf32>
    %30 = vector.shape_cast %29 : vector<8xf32> to vector<8x1xf32>
    %31 = tpu.reciprocal %30 {approx = true} : vector<8x1xf32> -> vector<8x1xf32>
    %32 = vector.broadcast %31 : vector<8x1xf32> to vector<8x8xf32>
    %33 = arith.mulf %28, %32 : vector<8x8xf32>
    %34 = arith.truncf %33 : vector<8x8xf32> to vector<8x8xbf16>
    %35 = arith.truncf %18 : vector<8x128xf32> to vector<8x128xbf16>
    %cst_17 = arith.constant dense<0.000000e+00> : vector<8x128xf32>
    %36 = tpu.matmul %34, %35, %cst_17 {dimension_numbers = #tpu.dot_dimension_numbers<[1], [0], [0], [1], [0, 0, 1, 1], [], []>} : vector<8x8xbf16>, vector<8x128xbf16>, vector<8x128xf32> -> vector<8x128xf32>
    %37 = arith.truncf %36 : vector<8x128xf32> to vector<8x128xbf16>
    %38 = vector.extract_strided_slice %15 {offsets = [0, 0], sizes = [128, 32], strides = [1, 1]} : vector<256x32xbf16> to vector<128x32xbf16>
    %cst_18 = arith.constant dense<0.000000e+00> : vector<8x32xf32>
    %39 = tpu.matmul %37, %38, %cst_18 {dimension_numbers = #tpu.dot_dimension_numbers<[1], [0], [0], [1], [0, 0, 1, 1], [], []>} : vector<8x128xbf16>, vector<128x32xbf16>, vector<8x32xf32> -> vector<8x32xf32>
    %40 = vector.extract_strided_slice %11 {offsets = [0, 128], sizes = [8, 128], strides = [1, 1]} : vector<8x768xf32> to vector<8x128xf32>
    %41 = vector.extract_strided_slice %11 {offsets = [0, 384], sizes = [8, 128], strides = [1, 1]} : vector<8x768xf32> to vector<8x128xf32>
    %42 = vector.extract_strided_slice %11 {offsets = [0, 640], sizes = [8, 128], strides = [1, 1]} : vector<8x768xf32> to vector<8x128xf32>
    %43 = arith.truncf %40 : vector<8x128xf32> to vector<8x128xbf16>
    %44 = arith.truncf %41 : vector<8x128xf32> to vector<8x128xbf16>
    %cst_19 = arith.constant dense<0.000000e+00> : vector<8x8xf32>
    %45 = tpu.matmul %43, %44, %cst_19 {dimension_numbers = #tpu.dot_dimension_numbers<[1], [1], [0], [0], [0, 0, 1, 0], [], []>} : vector<8x128xbf16>, vector<8x128xbf16>, vector<8x8xf32> -> vector<8x8xf32>
    %46 = vector.broadcast %13 : vector<1x8xf32> to vector<8x8xf32>
    %47 = arith.addf %45, %46 : vector<8x8xf32>
    %cst_20 = arith.constant dense<0xFF800000> : vector<8xf32>
    %48 = vector.multi_reduction <maximumf>, %47, %cst_20 [1] : vector<8x8xf32> to vector<8xf32>
    %49 = vector.shape_cast %48 : vector<8xf32> to vector<8x1xf32>
    %50 = vector.broadcast %49 : vector<8x1xf32> to vector<8x8xf32>
    %51 = arith.subf %47, %50 : vector<8x8xf32>
    %52 = math.exp %51 : vector<8x8xf32>
    %cst_21 = arith.constant dense<0.000000e+00> : vector<8xf32>
    %53 = vector.multi_reduction <add>, %52, %cst_21 [1] : vector<8x8xf32> to vector<8xf32>
    %54 = vector.shape_cast %53 : vector<8xf32> to vector<8x1xf32>
    %55 = tpu.reciprocal %54 {approx = true} : vector<8x1xf32> -> vector<8x1xf32>
    %56 = vector.broadcast %55 : vector<8x1xf32> to vector<8x8xf32>
    %57 = arith.mulf %52, %56 : vector<8x8xf32>
    %58 = arith.truncf %57 : vector<8x8xf32> to vector<8x8xbf16>
    %59 = arith.truncf %42 : vector<8x128xf32> to vector<8x128xbf16>
    %cst_22 = arith.constant dense<0.000000e+00> : vector<8x128xf32>
    %60 = tpu.matmul %58, %59, %cst_22 {dimension_numbers = #tpu.dot_dimension_numbers<[1], [0], [0], [1], [0, 0, 1, 1], [], []>} : vector<8x8xbf16>, vector<8x128xbf16>, vector<8x128xf32> -> vector<8x128xf32>
    %61 = arith.truncf %60 : vector<8x128xf32> to vector<8x128xbf16>
    %62 = vector.extract_strided_slice %15 {offsets = [128, 0], sizes = [128, 32], strides = [1, 1]} : vector<256x32xbf16> to vector<128x32xbf16>
    %cst_23 = arith.constant dense<0.000000e+00> : vector<8x32xf32>
    %63 = tpu.matmul %61, %62, %cst_23 {dimension_numbers = #tpu.dot_dimension_numbers<[1], [0], [0], [1], [0, 0, 1, 1], [], []>} : vector<8x128xbf16>, vector<128x32xbf16>, vector<8x32xf32> -> vector<8x32xf32>
    %64 = arith.addf %39, %63 : vector<8x32xf32>
    %c0_24 = arith.constant 0 : index
    %c0_25 = arith.constant 0 : index
    %c0_26 = arith.constant 0 : index
    %65 = vector.load %arg9[%c0_24, %c0_25, %c0_26] : memref<1x1x32xf32, #tpu.memory_space<vmem>>, vector<1x1x32xf32>
    %66 = vector.shape_cast %65 : vector<1x1x32xf32> to vector<1x32xf32>
    %67 = vector.broadcast %66 : vector<1x32xf32> to vector<8x32xf32>
    %68 = arith.addf %64, %67 : vector<8x32xf32>
    %69 = arith.addf %3, %68 : vector<8x32xf32>
    %c0_27 = arith.constant 0 : index
    %c0_28 = arith.constant 0 : index
    %c0_29 = arith.constant 0 : index
    %70 = vector.load %arg10[%c0_27, %c0_28, %c0_29] : memref<1x1x32xf32, #tpu.memory_space<vmem>>, vector<1x1x32xf32>
    %71 = vector.shape_cast %70 : vector<1x1x32xf32> to vector<1x32xf32>
    %c0_30 = arith.constant 0 : index
    %c0_31 = arith.constant 0 : index
    %c0_32 = arith.constant 0 : index
    %72 = vector.load %arg11[%c0_30, %c0_31, %c0_32] : memref<1x1x32xf32, #tpu.memory_space<vmem>>, vector<1x1x32xf32>
    %73 = vector.shape_cast %72 : vector<1x1x32xf32> to vector<1x32xf32>
    %cst_33 = arith.constant dense<0.000000e+00> : vector<8xf32>
    %74 = vector.multi_reduction <add>, %69, %cst_33 [1] : vector<8x32xf32> to vector<8xf32>
    %75 = vector.shape_cast %74 : vector<8xf32> to vector<8x1xf32>
    %cst_34 = arith.constant 3.200000e+01 : f32
    %76 = vector.broadcast %cst_34 : f32 to vector<8x1xf32>
    %77 = arith.divf %75, %76 : vector<8x1xf32>
    %78 = vector.broadcast %77 : vector<8x1xf32> to vector<8x32xf32>
    %79 = arith.subf %69, %78 : vector<8x32xf32>
    %80 = arith.mulf %79, %79 : vector<8x32xf32>
    %cst_35 = arith.constant dense<0.000000e+00> : vector<8xf32>
    %81 = vector.multi_reduction <add>, %80, %cst_35 [1] : vector<8x32xf32> to vector<8xf32>
    %82 = vector.shape_cast %81 : vector<8xf32> to vector<8x1xf32>
    %cst_36 = arith.constant 3.200000e+01 : f32
    %83 = vector.broadcast %cst_36 : f32 to vector<8x1xf32>
    %84 = arith.divf %82, %83 : vector<8x1xf32>
    %cst_37 = arith.constant 9.99999996E-13 : f32
    %85 = vector.broadcast %cst_37 : f32 to vector<8x1xf32>
    %86 = arith.addf %84, %85 : vector<8x1xf32>
    %87 = math.rsqrt %86 : vector<8x1xf32>
    %88 = vector.broadcast %87 : vector<8x1xf32> to vector<8x32xf32>
    %89 = arith.mulf %79, %88 : vector<8x32xf32>
    %90 = vector.broadcast %71 : vector<1x32xf32> to vector<8x32xf32>
    %91 = arith.mulf %89, %90 : vector<8x32xf32>
    %92 = vector.broadcast %73 : vector<1x32xf32> to vector<8x32xf32>
    %93 = arith.addf %91, %92 : vector<8x32xf32>
    %94 = arith.truncf %93 : vector<8x32xf32> to vector<8x32xbf16>
    %c0_38 = arith.constant 0 : index
    %c0_39 = arith.constant 0 : index
    %c0_40 = arith.constant 0 : index
    %95 = vector.load %arg12[%c0_38, %c0_39, %c0_40] : memref<1x32x64xbf16, #tpu.memory_space<vmem>>, vector<1x32x64xbf16>
    %96 = vector.shape_cast %95 : vector<1x32x64xbf16> to vector<32x64xbf16>
    %cst_41 = arith.constant dense<0.000000e+00> : vector<8x64xf32>
    %97 = tpu.matmul %94, %96, %cst_41 {dimension_numbers = #tpu.dot_dimension_numbers<[1], [0], [0], [1], [0, 0, 1, 1], [], []>} : vector<8x32xbf16>, vector<32x64xbf16>, vector<8x64xf32> -> vector<8x64xf32>
    %c0_42 = arith.constant 0 : index
    %c0_43 = arith.constant 0 : index
    %c0_44 = arith.constant 0 : index
    %98 = vector.load %arg13[%c0_42, %c0_43, %c0_44] : memref<1x1x64xf32, #tpu.memory_space<vmem>>, vector<1x1x64xf32>
    %99 = vector.shape_cast %98 : vector<1x1x64xf32> to vector<1x64xf32>
    %100 = vector.broadcast %99 : vector<1x64xf32> to vector<8x64xf32>
    %101 = arith.addf %97, %100 : vector<8x64xf32>
    %cst_45 = arith.constant 5.000000e-01 : f32
    %102 = vector.broadcast %cst_45 : f32 to vector<8x64xf32>
    %103 = arith.mulf %102, %101 : vector<8x64xf32>
    %cst_46 = arith.constant 4.471500e-02 : f32
    %104 = vector.broadcast %cst_46 : f32 to vector<8x64xf32>
    %105 = arith.mulf %104, %101 : vector<8x64xf32>
    %106 = arith.mulf %105, %101 : vector<8x64xf32>
    %107 = arith.mulf %106, %101 : vector<8x64xf32>
    %108 = arith.addf %101, %107 : vector<8x64xf32>
    %cst_47 = arith.constant 0.797884583 : f32
    %109 = vector.broadcast %cst_47 : f32 to vector<8x64xf32>
    %110 = arith.mulf %109, %108 : vector<8x64xf32>
    %111 = math.tanh %110 : vector<8x64xf32>
    %cst_48 = arith.constant 1.000000e+00 : f32
    %112 = vector.broadcast %cst_48 : f32 to vector<8x64xf32>
    %113 = arith.addf %112, %111 : vector<8x64xf32>
    %114 = arith.mulf %103, %113 : vector<8x64xf32>
    %115 = arith.truncf %114 : vector<8x64xf32> to vector<8x64xbf16>
    %c0_49 = arith.constant 0 : index
    %c0_50 = arith.constant 0 : index
    %c0_51 = arith.constant 0 : index
    %116 = vector.load %arg14[%c0_49, %c0_50, %c0_51] : memref<1x64x32xbf16, #tpu.memory_space<vmem>>, vector<1x64x32xbf16>
    %117 = vector.shape_cast %116 : vector<1x64x32xbf16> to vector<64x32xbf16>
    %cst_52 = arith.constant dense<0.000000e+00> : vector<8x32xf32>
    %118 = tpu.matmul %115, %117, %cst_52 {dimension_numbers = #tpu.dot_dimension_numbers<[1], [0], [0], [1], [0, 0, 1, 1], [], []>} : vector<8x64xbf16>, vector<64x32xbf16>, vector<8x32xf32> -> vector<8x32xf32>
    %c0_53 = arith.constant 0 : index
    %c0_54 = arith.constant 0 : index
    %c0_55 = arith.constant 0 : index
    %119 = vector.load %arg15[%c0_53, %c0_54, %c0_55] : memref<1x1x32xf32, #tpu.memory_space<vmem>>, vector<1x1x32xf32>
    %120 = vector.shape_cast %119 : vector<1x1x32xf32> to vector<1x32xf32>
    %121 = vector.broadcast %120 : vector<1x32xf32> to vector<8x32xf32>
    %122 = arith.addf %118, %121 : vector<8x32xf32>
    %123 = arith.addf %93, %122 : vector<8x32xf32>
    %c0_56 = arith.constant 0 : index
    %c0_57 = arith.constant 0 : index
    %c0_58 = arith.constant 0 : index
    %124 = vector.load %arg16[%c0_56, %c0_57, %c0_58] : memref<1x1x32xf32, #tpu.memory_space<vmem>>, vector<1x1x32xf32>
    %125 = vector.shape_cast %124 : vector<1x1x32xf32> to vector<1x32xf32>
    %c0_59 = arith.constant 0 : index
    %c0_60 = arith.constant 0 : index
    %c0_61 = arith.constant 0 : index
    %126 = vector.load %arg17[%c0_59, %c0_60, %c0_61] : memref<1x1x32xf32, #tpu.memory_space<vmem>>, vector<1x1x32xf32>
    %127 = vector.shape_cast %126 : vector<1x1x32xf32> to vector<1x32xf32>
    %cst_62 = arith.constant dense<0.000000e+00> : vector<8xf32>
    %128 = vector.multi_reduction <add>, %123, %cst_62 [1] : vector<8x32xf32> to vector<8xf32>
    %129 = vector.shape_cast %128 : vector<8xf32> to vector<8x1xf32>
    %cst_63 = arith.constant 3.200000e+01 : f32
    %130 = vector.broadcast %cst_63 : f32 to vector<8x1xf32>
    %131 = arith.divf %129, %130 : vector<8x1xf32>
    %132 = vector.broadcast %131 : vector<8x1xf32> to vector<8x32xf32>
    %133 = arith.subf %123, %132 : vector<8x32xf32>
    %134 = arith.mulf %133, %133 : vector<8x32xf32>
    %cst_64 = arith.constant dense<0.000000e+00> : vector<8xf32>
    %135 = vector.multi_reduction <add>, %134, %cst_64 [1] : vector<8x32xf32> to vector<8xf32>
    %136 = vector.shape_cast %135 : vector<8xf32> to vector<8x1xf32>
    %cst_65 = arith.constant 3.200000e+01 : f32
    %137 = vector.broadcast %cst_65 : f32 to vector<8x1xf32>
    %138 = arith.divf %136, %137 : vector<8x1xf32>
    %cst_66 = arith.constant 9.99999996E-13 : f32
    %139 = vector.broadcast %cst_66 : f32 to vector<8x1xf32>
    %140 = arith.addf %138, %139 : vector<8x1xf32>
    %141 = math.rsqrt %140 : vector<8x1xf32>
    %142 = vector.broadcast %141 : vector<8x1xf32> to vector<8x32xf32>
    %143 = arith.mulf %133, %142 : vector<8x32xf32>
    %144 = vector.broadcast %125 : vector<1x32xf32> to vector<8x32xf32>
    %145 = arith.mulf %143, %144 : vector<8x32xf32>
    %146 = vector.broadcast %127 : vector<1x32xf32> to vector<8x32xf32>
    %147 = arith.addf %145, %146 : vector<8x32xf32>
    %c0_67 = arith.constant 0 : index
    %c0_68 = arith.constant 0 : index
    %148 = vector.load %arg21[%c0_67, %c0_68] : memref<8x32xf32, #tpu.memory_space<vmem>>, vector<8x32xf32>
    tpu.vector_store %arg21[%c0_67, %c0_68], %147 {strides = array<i32>} : memref<8x32xf32, #tpu.memory_space<vmem>>, vector<8x32xf32>,
    %c1_i32 = arith.constant 1 : i32
    %149 = arith.cmpi eq, %arg1, %c1_i32 : i32
    %150 = arith.extui %149 : i1 to i32
    %c0_i32_69 = arith.constant 0 : i32
    %151 = arith.cmpi ne, %150, %c0_i32_69 : i32
    scf.if %151 {
      %152 = vector.extract_strided_slice %147 {offsets = [0, 0], sizes = [1, 32], strides = [1, 1]} : vector<8x32xf32> to vector<1x32xf32>
      %153 = arith.truncf %152 : vector<1x32xf32> to vector<1x32xbf16>
      %c0_70 = arith.constant 0 : index
      %c0_71 = arith.constant 0 : index
      %154 = vector.load %arg18[%c0_70, %c0_71] : memref<32x128xbf16, #tpu.memory_space<vmem>>, vector<32x128xbf16>
      %cst_72 = arith.constant dense<0.000000e+00> : vector<1x128xf32>
      %155 = tpu.matmul %153, %154, %cst_72 {dimension_numbers = #tpu.dot_dimension_numbers<[1], [0], [0], [1], [0, 0, 1, 1], [], []>} : vector<1x32xbf16>, vector<32x128xbf16>, vector<1x128xf32> -> vector<1x128xf32>
      %c0_73 = arith.constant 0 : index
      %c0_74 = arith.constant 0 : index
      %156 = vector.load %arg19[%c0_73, %c0_74] : memref<1x128xf32, #tpu.memory_space<vmem>>, vector<1x128xf32>
      %157 = arith.addf %155, %156 : vector<1x128xf32>
      %c0_75 = arith.constant 0 : index
      %c0_76 = arith.constant 0 : index
      %c0_77 = arith.constant 0 : index
      %158 = vector.load %arg20[%c0_75, %c0_76, %c0_77] : memref<1x1x128xf32, #tpu.memory_space<vmem>>, vector<1x1x128xf32>
      %159 = vector.shape_cast %158 : vector<1x1x128xf32> to vector<1x128xf32>
      %160 = vector.shape_cast %157 : vector<1x128xf32> to vector<1x1x128xf32>
      tpu.vector_store %arg20[%c0_75, %c0_76, %c0_77], %160 {strides = array<i32>} : memref<1x1x128xf32, #tpu.memory_space<vmem>>, vector<1x1x128xf32>,
    } else {
    }
    return
  }
  func.func @transform_0(%arg0: i32, %arg1: i32) -> (i32, i32, i32) {
    %c0_i32 = arith.constant 0 : i32
    %c0_i32_0 = arith.constant 0 : i32
    %c0_i32_1 = arith.constant 0 : i32
    return %arg0, %c0_i32, %c0_i32_0 : i32, i32, i32
  }
  func.func @transform_1(%arg0: i32, %arg1: i32) -> (i32, i32, i32) {
    %c0_i32 = arith.constant 0 : i32
    %c0_i32_0 = arith.constant 0 : i32
    %c0_i32_1 = arith.constant 0 : i32
    return %arg0, %c0_i32, %c0_i32_0 : i32, i32, i32
  }
  func.func @transform_2(%arg0: i32, %arg1: i32) -> (i32, i32) {
    %c0_i32 = arith.constant 0 : i32
    %c0_i32_0 = arith.constant 0 : i32
    %c0_i32_1 = arith.constant 0 : i32
    return %c0_i32, %c0_i32_0 : i32, i32
  }
  func.func @transform_3(%arg0: i32, %arg1: i32) -> (i32, i32) {
    %c0_i32 = arith.constant 0 : i32
    %c0_i32_0 = arith.constant 0 : i32
    %c0_i32_1 = arith.constant 0 : i32
    return %c0_i32, %c0_i32_0 : i32, i32
  }
  func.func @transform_4(%arg0: i32, %arg1: i32) -> (i32, i32, i32) {
    %c0_i32 = arith.constant 0 : i32
    %c0_i32_0 = arith.constant 0 : i32
    %c0_i32_1 = arith.constant 0 : i32
    return %arg1, %c0_i32, %c0_i32_0 : i32, i32, i32
  }
  func.func @transform_5(%arg0: i32, %arg1: i32) -> (i32, i32, i32) {
    %c0_i32 = arith.constant 0 : i32
    %c0_i32_0 = arith.constant 0 : i32
    %c0_i32_1 = arith.constant 0 : i32
    return %arg1, %c0_i32, %c0_i32_0 : i32, i32, i32
  }
  func.func @transform_6(%arg0: i32, %arg1: i32) -> (i32, i32, i32) {
    %c0_i32 = arith.constant 0 : i32
    %c0_i32_0 = arith.constant 0 : i32
    %c0_i32_1 = arith.constant 0 : i32
    return %arg1, %c0_i32, %c0_i32_0 : i32, i32, i32
  }
  func.func @transform_7(%arg0: i32, %arg1: i32) -> (i32, i32, i32) {
    %c0_i32 = arith.constant 0 : i32
    %c0_i32_0 = arith.constant 0 : i32
    %c0_i32_1 = arith.constant 0 : i32
    return %arg1, %c0_i32, %c0_i32_0 : i32, i32, i32
  }
  func.func @transform_8(%arg0: i32, %arg1: i32) -> (i32, i32, i32) {
    %c0_i32 = arith.constant 0 : i32
    %c0_i32_0 = arith.constant 0 : i32
    %c0_i32_1 = arith.constant 0 : i32
    return %arg1, %c0_i32, %c0_i32_0 : i32, i32, i32
  }
  func.func @transform_9(%arg0: i32, %arg1: i32) -> (i32, i32, i32) {
    %c0_i32 = arith.constant 0 : i32
    %c0_i32_0 = arith.constant 0 : i32
    %c0_i32_1 = arith.constant 0 : i32
    return %arg1, %c0_i32, %c0_i32_0 : i32, i32, i32
  }
  func.func @transform_10(%arg0: i32, %arg1: i32) -> (i32, i32, i32) {
    %c0_i32 = arith.constant 0 : i32
    %c0_i32_0 = arith.constant 0 : i32
    %c0_i32_1 = arith.constant 0 : i32
    return %arg1, %c0_i32, %c0_i32_0 : i32, i32, i32
  }
  func.func @transform_11(%arg0: i32, %arg1: i32) -> (i32, i32, i32) {
    %c0_i32 = arith.constant 0 : i32
    %c0_i32_0 = arith.constant 0 : i32
    %c0_i32_1 = arith.constant 0 : i32
    return %arg1, %c0_i32, %c0_i32_0 : i32, i32, i32
  }
  func.func @transform_12(%arg0: i32, %arg1: i32) -> (i32, i32, i32) {
    %c0_i32 = arith.constant 0 : i32
    %c0_i32_0 = arith.constant 0 : i32
    %c0_i32_1 = arith.constant 0 : i32
    return %arg1, %c0_i32, %c0_i32_0 : i32, i32, i32
  }
  func.func @transform_13(%arg0: i32, %arg1: i32) -> (i32, i32, i32) {
    %c0_i32 = arith.constant 0 : i32
    %c0_i32_0 = arith.constant 0 : i32
    %c0_i32_1 = arith.constant 0 : i32
    return %arg1, %c0_i32, %c0_i32_0 : i32, i32, i32
  }
  func.func @transform_14(%arg0: i32, %arg1: i32) -> (i32, i32, i32) {
    %c0_i32 = arith.constant 0 : i32
    %c0_i32_0 = arith.constant 0 : i32
    %c0_i32_1 = arith.constant 0 : i32
    return %arg1, %c0_i32, %c0_i32_0 : i32, i32, i32
  }
  func.func @transform_15(%arg0: i32, %arg1: i32) -> (i32, i32, i32) {
    %c0_i32 = arith.constant 0 : i32
    %c0_i32_0 = arith.constant 0 : i32
    %c0_i32_1 = arith.constant 0 : i32
    return %arg1, %c0_i32, %c0_i32_0 : i32, i32, i32
  }
  func.func @transform_16(%arg0: i32, %arg1: i32) -> (i32, i32) {
    %c0_i32 = arith.constant 0 : i32
    %c0_i32_0 = arith.constant 0 : i32
    %c0_i32_1 = arith.constant 0 : i32
    return %c0_i32, %c0_i32_0 : i32, i32
  }
  func.func @transform_17(%arg0: i32, %arg1: i32) -> (i32, i32) {
    %c0_i32 = arith.constant 0 : i32
    %c0_i32_0 = arith.constant 0 : i32
    %c0_i32_1 = arith.constant 0 : i32
    return %c0_i32, %c0_i32_0 : i32, i32
  }
  func.func @transform_18(%arg0: i32, %arg1: i32) -> (i32, i32, i32) {
    %c0_i32 = arith.constant 0 : i32
    %c0_i32_0 = arith.constant 0 : i32
    %c0_i32_1 = arith.constant 0 : i32
    return %arg0, %c0_i32, %c0_i32_0 : i32, i32, i32
  }
}

</mosaic_0001>

<llo_original>
// kernel: bert_sentiment_forward.1
$region0: #{bert_sentiment_forward.1}
  #allocation0 [shape = 'u32[]', space=smem, size = 0x4, offset = 0x4, fixed_abs, tag = 'smem constant byte address 0x4 - core index']
  #allocation1 [shape = 'u32[144,128]{1,0:T(1,128)}', space=vmem, size = 0x12000, scoped, tag = 'internal scratch']
  #allocation2 [shape = 'f32[8,32]{1,0:T(8,128)}', space=vmem, size = 0x1000, scoped, tag = 'scratch operand']
  %s0 = inlined_call_operand.vmem [shape: f32[2,8,32], index: 0, kind: input, shape index: {}]
  %s1 = inlined_call_operand.vmem [shape: f32[2,1,8], index: 1, kind: input, shape index: {}]
  %s2 = inlined_call_operand.vmem [shape: f32[1,32], index: 2, kind: input, shape index: {}]
  %s3 = inlined_call_operand.vmem [shape: f32[1,32], index: 3, kind: input, shape index: {}]
  %s4 = inlined_call_operand.vmem [shape: bf16[2,32,768], index: 4, kind: input, shape index: {}]
  %s5 = inlined_call_operand.vmem [shape: f32[2,1,768], index: 5, kind: input, shape index: {}]
  %s6 = inlined_call_operand.vmem [shape: bf16[2,256,32], index: 6, kind: input, shape index: {}]
  %s7 = inlined_call_operand.vmem [shape: f32[2,1,32], index: 7, kind: input, shape index: {}]
  %s8 = inlined_call_operand.vmem [shape: f32[2,1,32], index: 8, kind: input, shape index: {}]
  %s9 = inlined_call_operand.vmem [shape: f32[2,1,32], index: 9, kind: input, shape index: {}]
  %s10 = inlined_call_operand.vmem [shape: bf16[2,32,64], index: 10, kind: input, shape index: {}]
  %s11 = inlined_call_operand.vmem [shape: f32[2,1,64], index: 11, kind: input, shape index: {}]
  %s12 = inlined_call_operand.vmem [shape: bf16[2,64,32], index: 12, kind: input, shape index: {}]
  %s13 = inlined_call_operand.vmem [shape: f32[2,1,32], index: 13, kind: input, shape index: {}]
  %s14 = inlined_call_operand.vmem [shape: f32[2,1,32], index: 14, kind: input, shape index: {}]
  %s15 = inlined_call_operand.vmem [shape: f32[2,1,32], index: 15, kind: input, shape index: {}]
  %s16 = inlined_call_operand.vmem [shape: bf16[32,128], index: 16, kind: input, shape index: {}]
  %s17 = inlined_call_operand.vmem [shape: f32[1,128], index: 17, kind: input, shape index: {}]
  %s18 = inlined_call_operand.hbm [shape: f32[2,1,128], index: 18, kind: output, shape index: {}]
  %s19 = sld [smem:[#allocation0]]
  $region113: #{bert_sentiment_forward.1} parent=0
    _
  %s21 = ssub.s32 1, %s19
  %s22 = scalar_select 0, %s21, %s19
  $region1: #{bert_sentiment_forward.1} parent=0
    #allocation3 [shape = 'u8[1024]{0}', space=vmem, size = 0x400, scoped, tag = 'output window, operand 0']
    #allocation4 [shape = 's32[2]{0}', space=sflag, size = 0x8, scoped, tag = 'scoped memory for bert_sentiment_forward.1']
    %23 = vsyncpa [#allocation4], 0
    %s24 = scalar_lea.sflag [#allocation4], 1
    %25 = vsyncpa %s24, 0
    loop: start=0, step=1, limit=6
    $region2: #{bert_sentiment_forward.1} parent=1 // loop_pre_header
      _
    $region3: #{bert_sentiment_forward.1} parent=1 // loop_header
      %s27 = sphi 0, %s31
      %p28 = scmp.ge.s32.totalorder %s27, 6
      %s34 = sphi 0, %s46
      %s35 = sphi 0, %s42
      %s36 = sphi 0, %s34
      %s37 = sphi 0, %s35
      %s38 = sphi 0, %s36
      %s39 = sphi 0, %s37
      %s49 = sphi 0, %s51
      %s52 = sphi 0, %s49
      %s53 = sphi 0, %s52
      %s69 = sphi 0, %s53
      %s75 = sphi 0, %s77
      %s78 = sphi 0, %s75
      %s79 = sphi 0, %s78
      %s95 = sphi 0, %s79
      %s99 = sphi 0, %s99
      %s101 = sphi 0, %s99
      %s102 = sphi 0, %s101
      %s116 = sphi 0, %s102
      %s120 = sphi 0, %s120
      %s122 = sphi 0, %s120
      %s123 = sphi 0, %s122
      %s137 = sphi 0, %s123
      %s143 = sphi 0, %s145
      %s146 = sphi 0, %s143
      %s147 = sphi 0, %s146
      %s163 = sphi 0, %s147
      %s169 = sphi 0, %s171
      %s172 = sphi 0, %s169
      %s173 = sphi 0, %s172
      %s189 = sphi 0, %s173
      %s195 = sphi 0, %s197
      %s198 = sphi 0, %s195
      %s199 = sphi 0, %s198
      %s215 = sphi 0, %s199
      %s221 = sphi 0, %s223
      %s224 = sphi 0, %s221
      %s225 = sphi 0, %s224
      %s241 = sphi 0, %s225
      %s247 = sphi 0, %s249
      %s250 = sphi 0, %s247
      %s251 = sphi 0, %s250
      %s267 = sphi 0, %s251
      %s273 = sphi 0, %s275
      %s276 = sphi 0, %s273
      %s277 = sphi 0, %s276
      %s293 = sphi 0, %s277
      %s299 = sphi 0, %s301
      %s302 = sphi 0, %s299
      %s303 = sphi 0, %s302
      %s319 = sphi 0, %s303
      %s325 = sphi 0, %s327
      %s328 = sphi 0, %s325
      %s329 = sphi 0, %s328
      %s345 = sphi 0, %s329
      %s351 = sphi 0, %s353
      %s354 = sphi 0, %s351
      %s355 = sphi 0, %s354
      %s371 = sphi 0, %s355
      %s377 = sphi 0, %s379
      %s380 = sphi 0, %s377
      %s381 = sphi 0, %s380
      %s397 = sphi 0, %s381
      %s403 = sphi 0, %s405
      %s406 = sphi 0, %s403
      %s407 = sphi 0, %s406
      %s423 = sphi 0, %s407
      %s429 = sphi 0, %s431
      %s432 = sphi 0, %s429
      %s433 = sphi 0, %s432
      %s449 = sphi 0, %s433
      %s453 = sphi 0, %s453
      %s455 = sphi 0, %s453
      %s456 = sphi 0, %s455
      %s470 = sphi 0, %s456
      %s474 = sphi 0, %s474
      %s476 = sphi 0, %s474
      %s477 = sphi 0, %s476
      %s491 = sphi 0, %s477
      %s497 = sphi 0, %s499
      %s500 = sphi 0, %s497
      %s501 = sphi 0, %s500
      %s517 = sphi 0, %s501
    $region4: #{bert_sentiment_forward.1} parent=1 // loop_header_branch
      %30 = sbr.rel (%p28) target = $region8
    $region5: #{bert_sentiment_forward.1} parent=1 // loop_body
      %s32 = ssub.s32 %s27, 1
      %s33 = ssub.s32 %s27, 2
      %s40 = sadd.s32 1, %s35
      %p41 = scmp.ge.s32.totalorder %s40, 2
      %s42 = scalar_select %p41, 0, %s40
      %s43 = sadd.s32 1, %s34
      %s44 = scalar_select %p41, %s43, %s34
      %p45 = scmp.ge.s32.totalorder %s44, 2
      %s46 = scalar_select %p45, 0, %s44
      %s47 = ssub.s32 %s34, %s46
      %p48 = scmp.eq.s32.totalorder %s47, 0
      %s50 = sadd.s32 %s49, 1
      %s51 = scalar_select %p48, %s49, %s50
      %p54 = pneg %p48
      %p55 = scmp.eq.s32.totalorder %s27, 3
      %p56 = por %p54, %p55
      %p57 = scmp.ne.s32.totalorder %s49, %s52
      %p58 = scmp.eq.s32.totalorder %s27, 0
      %p59 = por %p57, %p58
      %p60 = scmp.ne.s32.totalorder %s49, %s52
      %p61 = scmp.eq.s32.totalorder %s32, 3
      %p62 = por %p60, %p61
      %p63 = scmp.ne.s32.totalorder %s52, %s53
      %p64 = scmp.eq.s32.totalorder %s32, 0
      %p65 = por %p63, %p64
      %p66 = scmp.ne.s32.totalorder %s52, %s53
      %p67 = scmp.eq.s32.totalorder %s33, 3
      %p68 = por %p66, %p67
      %p70 = scmp.ne.s32.totalorder %s53, %s69
      %p71 = scmp.eq.s32.totalorder %s33, 0
      %p72 = por %p70, %p71
      %s73 = ssub.s32 %s34, %s46
      %p74 = scmp.eq.s32.totalorder %s73, 0
      %s76 = sadd.s32 %s75, 1
      %s77 = scalar_select %p74, %s75, %s76
      %p80 = pneg %p74
      %p81 = scmp.eq.s32.totalorder %s27, 3
      %p82 = por %p80, %p81
      %p83 = scmp.ne.s32.totalorder %s75, %s78
      %p84 = scmp.eq.s32.totalorder %s27, 0
      %p85 = por %p83, %p84
      %p86 = scmp.ne.s32.totalorder %s75, %s78
      %p87 = scmp.eq.s32.totalorder %s32, 3
      %p88 = por %p86, %p87
      %p89 = scmp.ne.s32.totalorder %s78, %s79
      %p90 = scmp.eq.s32.totalorder %s32, 0
      %p91 = por %p89, %p90
      %p92 = scmp.ne.s32.totalorder %s78, %s79
      %p93 = scmp.eq.s32.totalorder %s33, 3
      %p94 = por %p92, %p93
      %p96 = scmp.ne.s32.totalorder %s79, %s95
      %p97 = scmp.eq.s32.totalorder %s33, 0
      %p98 = por %p96, %p97
      %s100 = sadd.s32 %s99, 1
      %p103 = scmp.eq.s32.totalorder %s27, 3
      %p104 = scmp.ne.s32.totalorder %s99, %s101
      %p105 = scmp.eq.s32.totalorder %s27, 0
      %p106 = por %p104, %p105
      %p107 = scmp.ne.s32.totalorder %s99, %s101
      %p108 = scmp.eq.s32.totalorder %s32, 3
      %p109 = por %p107, %p108
      %p110 = scmp.ne.s32.totalorder %s101, %s102
      %p111 = scmp.eq.s32.totalorder %s32, 0
      %p112 = por %p110, %p111
      %p113 = scmp.ne.s32.totalorder %s101, %s102
      %p114 = scmp.eq.s32.totalorder %s33, 3
      %p115 = por %p113, %p114
      %p117 = scmp.ne.s32.totalorder %s102, %s116
      %p118 = scmp.eq.s32.totalorder %s33, 0
      %p119 = por %p117, %p118
      %s121 = sadd.s32 %s120, 1
      %p124 = scmp.eq.s32.totalorder %s27, 3
      %p125 = scmp.ne.s32.totalorder %s120, %s122
      %p126 = scmp.eq.s32.totalorder %s27, 0
      %p127 = por %p125, %p126
      %p128 = scmp.ne.s32.totalorder %s120, %s122
      %p129 = scmp.eq.s32.totalorder %s32, 3
      %p130 = por %p128, %p129
      %p131 = scmp.ne.s32.totalorder %s122, %s123
      %p132 = scmp.eq.s32.totalorder %s32, 0
      %p133 = por %p131, %p132
      %p134 = scmp.ne.s32.totalorder %s122, %s123
      %p135 = scmp.eq.s32.totalorder %s33, 3
      %p136 = por %p134, %p135
      %p138 = scmp.ne.s32.totalorder %s123, %s137
      %p139 = scmp.eq.s32.totalorder %s33, 0
      %p140 = por %p138, %p139
      %s141 = ssub.s32 %s35, %s42
      %p142 = scmp.eq.s32.totalorder %s141, 0
      %s144 = sadd.s32 %s143, 1
      %s145 = scalar_select %p142, %s143, %s144
      %p148 = pneg %p142
      %p149 = scmp.eq.s32.totalorder %s27, 3
      %p150 = por %p148, %p149
      %p151 = scmp.ne.s32.totalorder %s143, %s146
      %p152 = scmp.eq.s32.totalorder %s27, 0
      %p153 = por %p151, %p152
      %p154 = scmp.ne.s32.totalorder %s143, %s146
      %p155 = scmp.eq.s32.totalorder %s32, 3
      %p156 = por %p154, %p155
      %p157 = scmp.ne.s32.totalorder %s146, %s147
      %p158 = scmp.eq.s32.totalorder %s32, 0
      %p159 = por %p157, %p158
      %p160 = scmp.ne.s32.totalorder %s146, %s147
      %p161 = scmp.eq.s32.totalorder %s33, 3
      %p162 = por %p160, %p161
      %p164 = scmp.ne.s32.totalorder %s147, %s163
      %p165 = scmp.eq.s32.totalorder %s33, 0
      %p166 = por %p164, %p165
      %s167 = ssub.s32 %s35, %s42
      %p168 = scmp.eq.s32.totalorder %s167, 0
      %s170 = sadd.s32 %s169, 1
      %s171 = scalar_select %p168, %s169, %s170
      %p174 = pneg %p168
      %p175 = scmp.eq.s32.totalorder %s27, 3
      %p176 = por %p174, %p175
      %p177 = scmp.ne.s32.totalorder %s169, %s172
      %p178 = scmp.eq.s32.totalorder %s27, 0
      %p179 = por %p177, %p178
      %p180 = scmp.ne.s32.totalorder %s169, %s172
      %p181 = scmp.eq.s32.totalorder %s32, 3
      %p182 = por %p180, %p181
      %p183 = scmp.ne.s32.totalorder %s172, %s173
      %p184 = scmp.eq.s32.totalorder %s32, 0
      %p185 = por %p183, %p184
      %p186 = scmp.ne.s32.totalorder %s172, %s173
      %p187 = scmp.eq.s32.totalorder %s33, 3
      %p188 = por %p186, %p187
      %p190 = scmp.ne.s32.totalorder %s173, %s189
      %p191 = scmp.eq.s32.totalorder %s33, 0
      %p192 = por %p190, %p191
      %s193 = ssub.s32 %s35, %s42
      %p194 = scmp.eq.s32.totalorder %s193, 0
      %s196 = sadd.s32 %s195, 1
      %s197 = scalar_select %p194, %s195, %s196
      %p200 = pneg %p194
      %p201 = scmp.eq.s32.totalorder %s27, 3
      %p202 = por %p200, %p201
      %p203 = scmp.ne.s32.totalorder %s195, %s198
      %p204 = scmp.eq.s32.totalorder %s27, 0
      %p205 = por %p203, %p204
      %p206 = scmp.ne.s32.totalorder %s195, %s198
      %p207 = scmp.eq.s32.totalorder %s32, 3
      %p208 = por %p206, %p207
      %p209 = scmp.ne.s32.totalorder %s198, %s199
      %p210 = scmp.eq.s32.totalorder %s32, 0
      %p211 = por %p209, %p210
      %p212 = scmp.ne.s32.totalorder %s198, %s199
      %p213 = scmp.eq.s32.totalorder %s33, 3
      %p214 = por %p212, %p213
      %p216 = scmp.ne.s32.totalorder %s199, %s215
      %p217 = scmp.eq.s32.totalorder %s33, 0
      %p218 = por %p216, %p217
      %s219 = ssub.s32 %s35, %s42
      %p220 = scmp.eq.s32.totalorder %s219, 0
      %s222 = sadd.s32 %s221, 1
      %s223 = scalar_select %p220, %s221, %s222
      %p226 = pneg %p220
      %p227 = scmp.eq.s32.totalorder %s27, 3
      %p228 = por %p226, %p227
      %p229 = scmp.ne.s32.totalorder %s221, %s224
      %p230 = scmp.eq.s32.totalorder %s27, 0
      %p231 = por %p229, %p230
      %p232 = scmp.ne.s32.totalorder %s221, %s224
      %p233 = scmp.eq.s32.totalorder %s32, 3
      %p234 = por %p232, %p233
      %p235 = scmp.ne.s32.totalorder %s224, %s225
      %p236 = scmp.eq.s32.totalorder %s32, 0
      %p237 = por %p235, %p236
      %p238 = scmp.ne.s32.totalorder %s224, %s225
      %p239 = scmp.eq.s32.totalorder %s33, 3
      %p240 = por %p238, %p239
      %p242 = scmp.ne.s32.totalorder %s225, %s241
      %p243 = scmp.eq.s32.totalorder %s33, 0
      %p244 = por %p242, %p243
      %s245 = ssub.s32 %s35, %s42
      %p246 = scmp.eq.s32.totalorder %s245, 0
      %s248 = sadd.s32 %s247, 1
      %s249 = scalar_select %p246, %s247, %s248
      %p252 = pneg %p246
      %p253 = scmp.eq.s32.totalorder %s27, 3
      %p254 = por %p252, %p253
      %p255 = scmp.ne.s32.totalorder %s247, %s250
      %p256 = scmp.eq.s32.totalorder %s27, 0
      %p257 = por %p255, %p256
      %p258 = scmp.ne.s32.totalorder %s247, %s250
      %p259 = scmp.eq.s32.totalorder %s32, 3
      %p260 = por %p258, %p259
      %p261 = scmp.ne.s32.totalorder %s250, %s251
      %p262 = scmp.eq.s32.totalorder %s32, 0
      %p263 = por %p261, %p262
      %p264 = scmp.ne.s32.totalorder %s250, %s251
      %p265 = scmp.eq.s32.totalorder %s33, 3
      %p266 = por %p264, %p265
      %p268 = scmp.ne.s32.totalorder %s251, %s267
      %p269 = scmp.eq.s32.totalorder %s33, 0
      %p270 = por %p268, %p269
      %s271 = ssub.s32 %s35, %s42
      %p272 = scmp.eq.s32.totalorder %s271, 0
      %s274 = sadd.s32 %s273, 1
      %s275 = scalar_select %p272, %s273, %s274
      %p278 = pneg %p272
      %p279 = scmp.eq.s32.totalorder %s27, 3
      %p280 = por %p278, %p279
      %p281 = scmp.ne.s32.totalorder %s273, %s276
      %p282 = scmp.eq.s32.totalorder %s27, 0
      %p283 = por %p281, %p282
      %p284 = scmp.ne.s32.totalorder %s273, %s276
      %p285 = scmp.eq.s32.totalorder %s32, 3
      %p286 = por %p284, %p285
      %p287 = scmp.ne.s32.totalorder %s276, %s277
      %p288 = scmp.eq.s32.totalorder %s32, 0
      %p289 = por %p287, %p288
      %p290 = scmp.ne.s32.totalorder %s276, %s277
      %p291 = scmp.eq.s32.totalorder %s33, 3
      %p292 = por %p290, %p291
      %p294 = scmp.ne.s32.totalorder %s277, %s293
      %p295 = scmp.eq.s32.totalorder %s33, 0
      %p296 = por %p294, %p295
      %s297 = ssub.s32 %s35, %s42
      %p298 = scmp.eq.s32.totalorder %s297, 0
      %s300 = sadd.s32 %s299, 1
      %s301 = scalar_select %p298, %s299, %s300
      %p304 = pneg %p298
      %p305 = scmp.eq.s32.totalorder %s27, 3
      %p306 = por %p304, %p305
      %p307 = scmp.ne.s32.totalorder %s299, %s302
      %p308 = scmp.eq.s32.totalorder %s27, 0
      %p309 = por %p307, %p308
      %p310 = scmp.ne.s32.totalorder %s299, %s302
      %p311 = scmp.eq.s32.totalorder %s32, 3
      %p312 = por %p310, %p311
      %p313 = scmp.ne.s32.totalorder %s302, %s303
      %p314 = scmp.eq.s32.totalorder %s32, 0
      %p315 = por %p313, %p314
      %p316 = scmp.ne.s32.totalorder %s302, %s303
      %p317 = scmp.eq.s32.totalorder %s33, 3
      %p318 = por %p316, %p317
      %p320 = scmp.ne.s32.totalorder %s303, %s319
      %p321 = scmp.eq.s32.totalorder %s33, 0
      %p322 = por %p320, %p321
      %s323 = ssub.s32 %s35, %s42
      %p324 = scmp.eq.s32.totalorder %s323, 0
      %s326 = sadd.s32 %s325, 1
      %s327 = scalar_select %p324, %s325, %s326
      %p330 = pneg %p324
      %p331 = scmp.eq.s32.totalorder %s27, 3
      %p332 = por %p330, %p331
      %p333 = scmp.ne.s32.totalorder %s325, %s328
      %p334 = scmp.eq.s32.totalorder %s27, 0
      %p335 = por %p333, %p334
      %p336 = scmp.ne.s32.totalorder %s325, %s328
      %p337 = scmp.eq.s32.totalorder %s32, 3
      %p338 = por %p336, %p337
      %p339 = scmp.ne.s32.totalorder %s328, %s329
      %p340 = scmp.eq.s32.totalorder %s32, 0
      %p341 = por %p339, %p340
      %p342 = scmp.ne.s32.totalorder %s328, %s329
      %p343 = scmp.eq.s32.totalorder %s33, 3
      %p344 = por %p342, %p343
      %p346 = scmp.ne.s32.totalorder %s329, %s345
      %p347 = scmp.eq.s32.totalorder %s33, 0
      %p348 = por %p346, %p347
      %s349 = ssub.s32 %s35, %s42
      %p350 = scmp.eq.s32.totalorder %s349, 0
      %s352 = sadd.s32 %s351, 1
      %s353 = scalar_select %p350, %s351, %s352
      %p356 = pneg %p350
      %p357 = scmp.eq.s32.totalorder %s27, 3
      %p358 = por %p356, %p357
      %p359 = scmp.ne.s32.totalorder %s351, %s354
      %p360 = scmp.eq.s32.totalorder %s27, 0
      %p361 = por %p359, %p360
      %p362 = scmp.ne.s32.totalorder %s351, %s354
      %p363 = scmp.eq.s32.totalorder %s32, 3
      %p364 = por %p362, %p363
      %p365 = scmp.ne.s32.totalorder %s354, %s355
      %p366 = scmp.eq.s32.totalorder %s32, 0
      %p367 = por %p365, %p366
      %p368 = scmp.ne.s32.totalorder %s354, %s355
      %p369 = scmp.eq.s32.totalorder %s33, 3
      %p370 = por %p368, %p369
      %p372 = scmp.ne.s32.totalorder %s355, %s371
      %p373 = scmp.eq.s32.totalorder %s33, 0
      %p374 = por %p372, %p373
      %s375 = ssub.s32 %s35, %s42
      %p376 = scmp.eq.s32.totalorder %s375, 0
      %s378 = sadd.s32 %s377, 1
      %s379 = scalar_select %p376, %s377, %s378
      %p382 = pneg %p376
      %p383 = scmp.eq.s32.totalorder %s27, 3
      %p384 = por %p382, %p383
      %p385 = scmp.ne.s32.totalorder %s377, %s380
      %p386 = scmp.eq.s32.totalorder %s27, 0
      %p387 = por %p385, %p386
      %p388 = scmp.ne.s32.totalorder %s377, %s380
      %p389 = scmp.eq.s32.totalorder %s32, 3
      %p390 = por %p388, %p389
      %p391 = scmp.ne.s32.totalorder %s380, %s381
      %p392 = scmp.eq.s32.totalorder %s32, 0
      %p393 = por %p391, %p392
      %p394 = scmp.ne.s32.totalorder %s380, %s381
      %p395 = scmp.eq.s32.totalorder %s33, 3
      %p396 = por %p394, %p395
      %p398 = scmp.ne.s32.totalorder %s381, %s397
      %p399 = scmp.eq.s32.totalorder %s33, 0
      %p400 = por %p398, %p399
      %s401 = ssub.s32 %s35, %s42
      %p402 = scmp.eq.s32.totalorder %s401, 0
      %s404 = sadd.s32 %s403, 1
      %s405 = scalar_select %p402, %s403, %s404
      %p408 = pneg %p402
      %p409 = scmp.eq.s32.totalorder %s27, 3
      %p410 = por %p408, %p409
      %p411 = scmp.ne.s32.totalorder %s403, %s406
      %p412 = scmp.eq.s32.totalorder %s27, 0
      %p413 = por %p411, %p412
      %p414 = scmp.ne.s32.totalorder %s403, %s406
      %p415 = scmp.eq.s32.totalorder %s32, 3
      %p416 = por %p414, %p415
      %p417 = scmp.ne.s32.totalorder %s406, %s407
      %p418 = scmp.eq.s32.totalorder %s32, 0
      %p419 = por %p417, %p418
      %p420 = scmp.ne.s32.totalorder %s406, %s407
      %p421 = scmp.eq.s32.totalorder %s33, 3
      %p422 = por %p420, %p421
      %p424 = scmp.ne.s32.totalorder %s407, %s423
      %p425 = scmp.eq.s32.totalorder %s33, 0
      %p426 = por %p424, %p425
      %s427 = ssub.s32 %s35, %s42
      %p428 = scmp.eq.s32.totalorder %s427, 0
      %s430 = sadd.s32 %s429, 1
      %s431 = scalar_select %p428, %s429, %s430
      %p434 = pneg %p428
      %p435 = scmp.eq.s32.totalorder %s27, 3
      %p436 = por %p434, %p435
      %p437 = scmp.ne.s32.totalorder %s429, %s432
      %p438 = scmp.eq.s32.totalorder %s27, 0
      %p439 = por %p437, %p438
      %p440 = scmp.ne.s32.totalorder %s429, %s432
      %p441 = scmp.eq.s32.totalorder %s32, 3
      %p442 = por %p440, %p441
      %p443 = scmp.ne.s32.totalorder %s432, %s433
      %p444 = scmp.eq.s32.totalorder %s32, 0
      %p445 = por %p443, %p444
      %p446 = scmp.ne.s32.totalorder %s432, %s433
      %p447 = scmp.eq.s32.totalorder %s33, 3
      %p448 = por %p446, %p447
      %p450 = scmp.ne.s32.totalorder %s433, %s449
      %p451 = scmp.eq.s32.totalorder %s33, 0
      %p452 = por %p450, %p451
      %s454 = sadd.s32 %s453, 1
      %p457 = scmp.eq.s32.totalorder %s27, 3
      %p458 = scmp.ne.s32.totalorder %s453, %s455
      %p459 = scmp.eq.s32.totalorder %s27, 0
      %p460 = por %p458, %p459
      %p461 = scmp.ne.s32.totalorder %s453, %s455
      %p462 = scmp.eq.s32.totalorder %s32, 3
      %p463 = por %p461, %p462
      %p464 = scmp.ne.s32.totalorder %s455, %s456
      %p465 = scmp.eq.s32.totalorder %s32, 0
      %p466 = por %p464, %p465
      %p467 = scmp.ne.s32.totalorder %s455, %s456
      %p468 = scmp.eq.s32.totalorder %s33, 3
      %p469 = por %p467, %p468
      %p471 = scmp.ne.s32.totalorder %s456, %s470
      %p472 = scmp.eq.s32.totalorder %s33, 0
      %p473 = por %p471, %p472
      %s475 = sadd.s32 %s474, 1
      %p478 = scmp.eq.s32.totalorder %s27, 3
      %p479 = scmp.ne.s32.totalorder %s474, %s476
      %p480 = scmp.eq.s32.totalorder %s27, 0
      %p481 = por %p479, %p480
      %p482 = scmp.ne.s32.totalorder %s474, %s476
      %p483 = scmp.eq.s32.totalorder %s32, 3
      %p484 = por %p482, %p483
      %p485 = scmp.ne.s32.totalorder %s476, %s477
      %p486 = scmp.eq.s32.totalorder %s32, 0
      %p487 = por %p485, %p486
      %p488 = scmp.ne.s32.totalorder %s476, %s477
      %p489 = scmp.eq.s32.totalorder %s33, 3
      %p490 = por %p488, %p489
      %p492 = scmp.ne.s32.totalorder %s477, %s491
      %p493 = scmp.eq.s32.totalorder %s33, 0
      %p494 = por %p492, %p493
      %s495 = ssub.s32 %s34, %s46
      %p496 = scmp.eq.s32.totalorder %s495, 0
      %s498 = sadd.s32 %s497, 1
      %s499 = scalar_select %p496, %s497, %s498
      %p502 = pneg %p496
      %p503 = scmp.eq.s32.totalorder %s27, 3
      %p504 = por %p502, %p503
      %p505 = scmp.ne.s32.totalorder %s497, %s500
      %p506 = scmp.eq.s32.totalorder %s27, 0
      %p507 = por %p505, %p506
      %p508 = scmp.ne.s32.totalorder %s497, %s500
      %p509 = scmp.eq.s32.totalorder %s32, 3
      %p510 = por %p508, %p509
      %p511 = scmp.ne.s32.totalorder %s500, %s501
      %p512 = scmp.eq.s32.totalorder %s32, 0
      %p513 = por %p511, %p512
      %p514 = scmp.ne.s32.totalorder %s500, %s501
      %p515 = scmp.eq.s32.totalorder %s33, 3
      %p516 = por %p514, %p515
      %p518 = scmp.ne.s32.totalorder %s501, %s517
      %p519 = scmp.eq.s32.totalorder %s33, 0
      %p520 = por %p518, %p519
      %p521 = scmp.le.s32.totalorder 1, %s27
      %p522 = scmp.lt.s32.totalorder %s27, 5
      %p523 = pnand %p521, %p522
      %p524 = pneg %p523
      // Predicated region
      $region9: #{bert_sentiment_forward.1} parent=5 // pred_check
        _
      $region10: #{bert_sentiment_forward.1} parent=5 // pred_check_branch
        %526 = sbr.rel (%p523) target = $region12
      $region11: #{bert_sentiment_forward.1} parent=5 // pred_region
        %s527 = ssub.s32 %s27, 1
        // Predicated region
        $region13: #{bert_sentiment_forward.1} parent=11 // pred_check
          %p528 = pneg %p112
        $region14: #{bert_sentiment_forward.1} parent=11 // pred_check_branch
          %530 = sbr.rel (%p528) target = $region16
        $region15: #{bert_sentiment_forward.1} parent=11 // pred_region
          _
        $region16: #{bert_sentiment_forward.1} parent=11 // pred_fallthru
          _
        // Predicated region
        $region17: #{bert_sentiment_forward.1} parent=11 // pred_check
          %p531 = pneg %p133
        $region18: #{bert_sentiment_forward.1} parent=11 // pred_check_branch
          %533 = sbr.rel (%p531) target = $region20
        $region19: #{bert_sentiment_forward.1} parent=11 // pred_region
          _
        $region20: #{bert_sentiment_forward.1} parent=11 // pred_fallthru
          _
        // Predicated region
        $region21: #{bert_sentiment_forward.1} parent=11 // pred_check
          %p534 = pneg %p466
        $region22: #{bert_sentiment_forward.1} parent=11 // pred_check_branch
          %536 = sbr.rel (%p534) target = $region24
        $region23: #{bert_sentiment_forward.1} parent=11 // pred_region
          _
        $region24: #{bert_sentiment_forward.1} parent=11 // pred_fallthru
          _
        // Predicated region
        $region25: #{bert_sentiment_forward.1} parent=11 // pred_check
          %p537 = pneg %p487
        $region26: #{bert_sentiment_forward.1} parent=11 // pred_check_branch
          %539 = sbr.rel (%p537) target = $region28
        $region27: #{bert_sentiment_forward.1} parent=11 // pred_region
          _
        $region28: #{bert_sentiment_forward.1} parent=11 // pred_fallthru
          _
      $region12: #{bert_sentiment_forward.1} parent=5 // pred_fallthru
        _
      %p540 = scmp.lt.s32.totalorder %s27, 4
      // Predicated region
      $region29: #{bert_sentiment_forward.1} parent=5 // pred_check
        %p541 = pneg %p540
      $region30: #{bert_sentiment_forward.1} parent=5 // pred_check_branch
        %543 = sbr.rel (%p541) target = $region32
      $region31: #{bert_sentiment_forward.1} parent=5 // pred_region
        // Predicated region
        $region33: #{bert_sentiment_forward.1} parent=31 // pred_check
          %p544 = pneg %p59
        $region34: #{bert_sentiment_forward.1} parent=31 // pred_check_branch
          %546 = sbr.rel (%p544) target = $region36
        $region35: #{bert_sentiment_forward.1} parent=31 // pred_region
          %p547 = scmp.lt.s32.totalorder %s34, 1
          %s548 = scalar_select %p547, %s34, 1
          %s549 = smul.addr %s548, 8
          %s550 = scalar_lea.vmem %s0, %s549
        $region36: #{bert_sentiment_forward.1} parent=31 // pred_fallthru
          _
        // Predicated region
        $region37: #{bert_sentiment_forward.1} parent=31 // pred_check
          %p551 = pneg %p85
        $region38: #{bert_sentiment_forward.1} parent=31 // pred_check_branch
          %553 = sbr.rel (%p551) target = $region40
        $region39: #{bert_sentiment_forward.1} parent=31 // pred_region
          %p554 = scmp.lt.s32.totalorder %s34, 1
          %s555 = scalar_select %p554, %s34, 1
          %s556 = scalar_lea.vmem %s1, %s555
        $region40: #{bert_sentiment_forward.1} parent=31 // pred_fallthru
          _
        // Predicated region
        $region41: #{bert_sentiment_forward.1} parent=31 // pred_check
          %p557 = pneg %p153
        $region42: #{bert_sentiment_forward.1} parent=31 // pred_check_branch
          %559 = sbr.rel (%p557) target = $region44
        $region43: #{bert_sentiment_forward.1} parent=31 // pred_region
          %p560 = scmp.lt.s32.totalorder %s35, 1
          %s561 = scalar_select %p560, %s35, 1
          %s562 = smul.addr %s561, 24
          %s563 = smul.addr %s562, 4
          %s564 = scalar_lea.vmem %s4, %s563
        $region44: #{bert_sentiment_forward.1} parent=31 // pred_fallthru
          _
        // Predicated region
        $region45: #{bert_sentiment_forward.1} parent=31 // pred_check
          %p565 = pneg %p179
        $region46: #{bert_sentiment_forward.1} parent=31 // pred_check_branch
          %567 = sbr.rel (%p565) target = $region48
        $region47: #{bert_sentiment_forward.1} parent=31 // pred_region
          %p568 = scmp.lt.s32.totalorder %s35, 1
          %s569 = scalar_select %p568, %s35, 1
          %s570 = smul.addr %s569, 6
          %s571 = scalar_lea.vmem %s5, %s570
        $region48: #{bert_sentiment_forward.1} parent=31 // pred_fallthru
          _
        // Predicated region
        $region49: #{bert_sentiment_forward.1} parent=31 // pred_check
          %p572 = pneg %p205
        $region50: #{bert_sentiment_forward.1} parent=31 // pred_check_branch
          %574 = sbr.rel (%p572) target = $region52
        $region51: #{bert_sentiment_forward.1} parent=31 // pred_region
          %p575 = scmp.lt.s32.totalorder %s35, 1
          %s576 = scalar_select %p575, %s35, 1
          %s577 = smul.addr %s576, 32
          %s578 = smul.addr %s577, 4
          %s579 = scalar_lea.vmem %s6, %s578
        $region52: #{bert_sentiment_forward.1} parent=31 // pred_fallthru
          _
        // Predicated region
        $region53: #{bert_sentiment_forward.1} parent=31 // pred_check
          %p580 = pneg %p231
        $region54: #{bert_sentiment_forward.1} parent=31 // pred_check_branch
          %582 = sbr.rel (%p580) target = $region56
        $region55: #{bert_sentiment_forward.1} parent=31 // pred_region
          %p583 = scmp.lt.s32.totalorder %s35, 1
          %s584 = scalar_select %p583, %s35, 1
          %s585 = scalar_lea.vmem %s7, %s584
        $region56: #{bert_sentiment_forward.1} parent=31 // pred_fallthru
          _
        // Predicated region
        $region57: #{bert_sentiment_forward.1} parent=31 // pred_check
          %p586 = pneg %p257
        $region58: #{bert_sentiment_forward.1} parent=31 // pred_check_branch
          %588 = sbr.rel (%p586) target = $region60
        $region59: #{bert_sentiment_forward.1} parent=31 // pred_region
          %p589 = scmp.lt.s32.totalorder %s35, 1
          %s590 = scalar_select %p589, %s35, 1
          %s591 = scalar_lea.vmem %s8, %s590
        $region60: #{bert_sentiment_forward.1} parent=31 // pred_fallthru
          _
        // Predicated region
        $region61: #{bert_sentiment_forward.1} parent=31 // pred_check
          %p592 = pneg %p283
        $region62: #{bert_sentiment_forward.1} parent=31 // pred_check_branch
          %594 = sbr.rel (%p592) target = $region64
        $region63: #{bert_sentiment_forward.1} parent=31 // pred_region
          %p595 = scmp.lt.s32.totalorder %s35, 1
          %s596 = scalar_select %p595, %s35, 1
          %s597 = scalar_lea.vmem %s9, %s596
        $region64: #{bert_sentiment_forward.1} parent=31 // pred_fallthru
          _
        // Predicated region
        $region65: #{bert_sentiment_forward.1} parent=31 // pred_check
          %p598 = pneg %p309
        $region66: #{bert_sentiment_forward.1} parent=31 // pred_check_branch
          %600 = sbr.rel (%p598) target = $region68
        $region67: #{bert_sentiment_forward.1} parent=31 // pred_region
          %p601 = scmp.lt.s32.totalorder %s35, 1
          %s602 = scalar_select %p601, %s35, 1
          %s603 = smul.addr %s602, 4
          %s604 = smul.addr %s603, 4
          %s605 = scalar_lea.vmem %s10, %s604
        $region68: #{bert_sentiment_forward.1} parent=31 // pred_fallthru
          _
        // Predicated region
        $region69: #{bert_sentiment_forward.1} parent=31 // pred_check
          %p606 = pneg %p335
        $region70: #{bert_sentiment_forward.1} parent=31 // pred_check_branch
          %608 = sbr.rel (%p606) target = $region72
        $region71: #{bert_sentiment_forward.1} parent=31 // pred_region
          %p609 = scmp.lt.s32.totalorder %s35, 1
          %s610 = scalar_select %p609, %s35, 1
          %s611 = scalar_lea.vmem %s11, %s610
        $region72: #{bert_sentiment_forward.1} parent=31 // pred_fallthru
          _
        // Predicated region
        $region73: #{bert_sentiment_forward.1} parent=31 // pred_check
          %p612 = pneg %p361
        $region74: #{bert_sentiment_forward.1} parent=31 // pred_check_branch
          %614 = sbr.rel (%p612) target = $region76
        $region75: #{bert_sentiment_forward.1} parent=31 // pred_region
          %p615 = scmp.lt.s32.totalorder %s35, 1
          %s616 = scalar_select %p615, %s35, 1
          %s617 = smul.addr %s616, 8
          %s618 = smul.addr %s617, 4
          %s619 = scalar_lea.vmem %s12, %s618
        $region76: #{bert_sentiment_forward.1} parent=31 // pred_fallthru
          _
        // Predicated region
        $region77: #{bert_sentiment_forward.1} parent=31 // pred_check
          %p620 = pneg %p387
        $region78: #{bert_sentiment_forward.1} parent=31 // pred_check_branch
          %622 = sbr.rel (%p620) target = $region80
        $region79: #{bert_sentiment_forward.1} parent=31 // pred_region
          %p623 = scmp.lt.s32.totalorder %s35, 1
          %s624 = scalar_select %p623, %s35, 1
          %s625 = scalar_lea.vmem %s13, %s624
        $region80: #{bert_sentiment_forward.1} parent=31 // pred_fallthru
          _
        // Predicated region
        $region81: #{bert_sentiment_forward.1} parent=31 // pred_check
          %p626 = pneg %p413
        $region82: #{bert_sentiment_forward.1} parent=31 // pred_check_branch
          %628 = sbr.rel (%p626) target = $region84
        $region83: #{bert_sentiment_forward.1} parent=31 // pred_region
          %p629 = scmp.lt.s32.totalorder %s35, 1
          %s630 = scalar_select %p629, %s35, 1
          %s631 = scalar_lea.vmem %s14, %s630
        $region84: #{bert_sentiment_forward.1} parent=31 // pred_fallthru
          _
        // Predicated region
        $region85: #{bert_sentiment_forward.1} parent=31 // pred_check
          %p632 = pneg %p439
        $region86: #{bert_sentiment_forward.1} parent=31 // pred_check_branch
          %634 = sbr.rel (%p632) target = $region88
        $region87: #{bert_sentiment_forward.1} parent=31 // pred_region
          %p635 = scmp.lt.s32.totalorder %s35, 1
          %s636 = scalar_select %p635, %s35, 1
          %s637 = scalar_lea.vmem %s15, %s636
        $region88: #{bert_sentiment_forward.1} parent=31 // pred_fallthru
          _
      $region32: #{bert_sentiment_forward.1} parent=5 // pred_fallthru
        _
      %p638 = scmp.le.s32.totalorder 1, %s27
      %p639 = scmp.lt.s32.totalorder %s27, 5
      %p640 = pnand %p638, %p639
      %p641 = pneg %p640
      // Predicated region
      $region89: #{bert_sentiment_forward.1} parent=5 // pred_check
        _
      $region90: #{bert_sentiment_forward.1} parent=5 // pred_check_branch
        %643 = sbr.rel (%p640) target = $region92
      $region91: #{bert_sentiment_forward.1} parent=5 // pred_region
        %s644 = ssub.s32 %s27, 1
        %p645 = scmp.lt.s32.totalorder %s36, 1
        %s646 = scalar_select %p645, %s36, 1
        %s647 = smul.addr %s646, 8
        %s648 = scalar_lea.vmem %s0, %s647
        %p649 = pneg %p65
        %p650 = pneg %p62
        %p651 = scmp.lt.s32.totalorder %s36, 1
        %s652 = scalar_select %p651, %s36, 1
        %s653 = scalar_lea.vmem %s1, %s652
        %p654 = pneg %p91
        %p655 = pneg %p88
        %p656 = pneg %p112
        %p657 = pneg %p109
        %p658 = pneg %p133
        %p659 = pneg %p130
        %p660 = scmp.lt.s32.totalorder %s37, 1
        %s661 = scalar_select %p660, %s37, 1
        %s662 = smul.addr %s661, 24
        %s663 = smul.addr %s662, 4
        %s664 = scalar_lea.vmem %s4, %s663
        %p665 = pneg %p159
        %p666 = pneg %p156
        %p667 = scmp.lt.s32.totalorder %s37, 1
        %s668 = scalar_select %p667, %s37, 1
        %s669 = smul.addr %s668, 6
        %s670 = scalar_lea.vmem %s5, %s669
        %p671 = pneg %p185
        %p672 = pneg %p182
        %p673 = scmp.lt.s32.totalorder %s37, 1
        %s674 = scalar_select %p673, %s37, 1
        %s675 = smul.addr %s674, 32
        %s676 = smul.addr %s675, 4
        %s677 = scalar_lea.vmem %s6, %s676
        %p678 = pneg %p211
        %p679 = pneg %p208
        %p680 = scmp.lt.s32.totalorder %s37, 1
        %s681 = scalar_select %p680, %s37, 1
        %s682 = scalar_lea.vmem %s7, %s681
        %p683 = pneg %p237
        %p684 = pneg %p234
        %p685 = scmp.lt.s32.totalorder %s37, 1
        %s686 = scalar_select %p685, %s37, 1
        %s687 = scalar_lea.vmem %s8, %s686
        %p688 = pneg %p263
        %p689 = pneg %p260
        %p690 = scmp.lt.s32.totalorder %s37, 1
        %s691 = scalar_select %p690, %s37, 1
        %s692 = scalar_lea.vmem %s9, %s691
        %p693 = pneg %p289
        %p694 = pneg %p286
        %p695 = scmp.lt.s32.totalorder %s37, 1
        %s696 = scalar_select %p695, %s37, 1
        %s697 = smul.addr %s696, 4
        %s698 = smul.addr %s697, 4
        %s699 = scalar_lea.vmem %s10, %s698
        %p700 = pneg %p315
        %p701 = pneg %p312
        %p702 = scmp.lt.s32.totalorder %s37, 1
        %s703 = scalar_select %p702, %s37, 1
        %s704 = scalar_lea.vmem %s11, %s703
        %p705 = pneg %p341
        %p706 = pneg %p338
        %p707 = scmp.lt.s32.totalorder %s37, 1
        %s708 = scalar_select %p707, %s37, 1
        %s709 = smul.addr %s708, 8
        %s710 = smul.addr %s709, 4
        %s711 = scalar_lea.vmem %s12, %s710
        %p712 = pneg %p367
        %p713 = pneg %p364
        %p714 = scmp.lt.s32.totalorder %s37, 1
        %s715 = scalar_select %p714, %s37, 1
        %s716 = scalar_lea.vmem %s13, %s715
        %p717 = pneg %p393
        %p718 = pneg %p390
        %p719 = scmp.lt.s32.totalorder %s37, 1
        %s720 = scalar_select %p719, %s37, 1
        %s721 = scalar_lea.vmem %s14, %s720
        %p722 = pneg %p419
        %p723 = pneg %p416
        %p724 = scmp.lt.s32.totalorder %s37, 1
        %s725 = scalar_select %p724, %s37, 1
        %s726 = scalar_lea.vmem %s15, %s725
        %p727 = pneg %p445
        %p728 = pneg %p442
        %p729 = pneg %p466
        %p730 = pneg %p463
        %p731 = pneg %p487
        %p732 = pneg %p484
        %p733 = pneg %p513
        %p734 = pneg %p510
        %s735 = sand.u32 %s500, 1
        %s736 = scalar_lea.sflag [#allocation4], %s735
        %s737 = sand.u32 %s500, 1
        %s738 = scalar_lea.vmem [#allocation3], %s737
        %p739 = scmp.lt.s32.totalorder %s36, 1
        %s740 = scalar_select %p739, %s36, 1
        %s741 = smul.addr %s740, 8
        %s742 = scalar_lea.vmem %s0, %s741
        %p743 = scmp.lt.s32.totalorder %s36, 1
        %s744 = scalar_select %p743, %s36, 1
        %s745 = scalar_lea.vmem %s1, %s744
        %p746 = scmp.lt.s32.totalorder %s37, 1
        %s747 = scalar_select %p746, %s37, 1
        %s748 = smul.addr %s747, 24
        %s749 = smul.addr %s748, 4
        %s750 = scalar_lea.vmem %s4, %s749
        %p751 = scmp.lt.s32.totalorder %s37, 1
        %s752 = scalar_select %p751, %s37, 1
        %s753 = smul.addr %s752, 6
        %s754 = scalar_lea.vmem %s5, %s753
        %p755 = scmp.lt.s32.totalorder %s37, 1
        %s756 = scalar_select %p755, %s37, 1
        %s757 = smul.addr %s756, 32
        %s758 = smul.addr %s757, 4
        %s759 = scalar_lea.vmem %s6, %s758
        %p760 = scmp.lt.s32.totalorder %s37, 1
        %s761 = scalar_select %p760, %s37, 1
        %s762 = scalar_lea.vmem %s7, %s761
        %p763 = scmp.lt.s32.totalorder %s37, 1
        %s764 = scalar_select %p763, %s37, 1
        %s765 = scalar_lea.vmem %s8, %s764
        %p766 = scmp.lt.s32.totalorder %s37, 1
        %s767 = scalar_select %p766, %s37, 1
        %s768 = scalar_lea.vmem %s9, %s767
        %p769 = scmp.lt.s32.totalorder %s37, 1
        %s770 = scalar_select %p769, %s37, 1
        %s771 = smul.addr %s770, 4
        %s772 = smul.addr %s771, 4
        %s773 = scalar_lea.vmem %s10, %s772
        %p774 = scmp.lt.s32.totalorder %s37, 1
        %s775 = scalar_select %p774, %s37, 1
        %s776 = scalar_lea.vmem %s11, %s775
        %p777 = scmp.lt.s32.totalorder %s37, 1
        %s778 = scalar_select %p777, %s37, 1
        %s779 = smul.addr %s778, 8
        %s780 = smul.addr %s779, 4
        %s781 = scalar_lea.vmem %s12, %s780
        %p782 = scmp.lt.s32.totalorder %s37, 1
        %s783 = scalar_select %p782, %s37, 1
        %s784 = scalar_lea.vmem %s13, %s783
        %p785 = scmp.lt.s32.totalorder %s37, 1
        %s786 = scalar_select %p785, %s37, 1
        %s787 = scalar_lea.vmem %s14, %s786
        %p788 = scmp.lt.s32.totalorder %s37, 1
        %s789 = scalar_select %p788, %s37, 1
        %s790 = scalar_lea.vmem %s15, %s789
        %p792 = scmp.eq.s32.totalorder %s37, 0
        // Predicated region
        $region93: #{bert_sentiment_forward.1} parent=91 // pred_check
          %p793 = pneg %p792
        $region94: #{bert_sentiment_forward.1} parent=91 // pred_check_branch
          %795 = sbr.rel (%p793) target = $region96
        $region95: #{bert_sentiment_forward.1} parent=91 // pred_region
          %v796 = vld [vmem:[%s742] sm:$0xff]
          %v797 = vld [vmem:[%s2] sm:$0x1]
          %v798 = vld [vmem:[%s3] sm:$0x1]
          %vm799 = vcmask 261120
          %v800 = vsel %vm799, %v796, 0.0
          %801 = vadd.xlane.f32.xlu0 %v800
          %v802 = vpop.xlane.xlu0 %801
          %v803 = vrcp.pop 32.0
          %v804 = vmul.f32 %v802, %v803
          %v805 = vsub.f32 %v796, %v804
          %v806 = vmul.f32 %v805, %v805
          %v807 = vsel %vm799, %v806, 0.0
          %808 = vadd.xlane.f32.xlu0 %v807
          %v809 = vpop.xlane.xlu0 %808
          %v810 = vmul.f32 %v809, %v803
          %v811 = vadd.f32 %v810, 1e-12
          %v812 = vrsqrt.pop %v811
          %v813 = vmul.f32 %v805, %v812
          %v815 = vlaneseq
          %v816 = vshrl.u32 %v815, 7
          %v817 = vsub.s32 0, %v816
          %v818 = vrot.slane %v797, %v817
          %v820 = vmul.f32 %v813, %v818
          %v822 = vlaneseq
          %v823 = vshrl.u32 %v822, 7
          %v824 = vsub.s32 0, %v823
          %v825 = vrot.slane %v798, %v824
          %v827 = vadd.f32 %v820, %v825
          %828 = vst.msk [vmem:[#allocation2] sm:$0xff] %vm799, %v827
        $region96: #{bert_sentiment_forward.1} parent=91 // pred_fallthru
          _
        %v829 = vld [vmem:[#allocation2] sm:$0xff]
        %v830 = vpack.c.bf16 %v829, %v829
        %v831 = vld [vmem:[%s750] sm:$0xff]
        %v832 = vld [vmem:[%s750 + $0x8] sm:$0xff]
        %v833 = vld [vmem:[%s750 + $0x10] sm:$0xff]
        %v834 = vld [vmem:[%s750 + $0x18] sm:$0xff]
        %v835 = vld [vmem:[%s750 + $0x20] sm:$0xff]
        %v836 = vld [vmem:[%s750 + $0x28] sm:$0xff]
        %v837 = vld [vmem:[%s750 + $0x30] sm:$0xff]
        %v838 = vld [vmem:[%s750 + $0x38] sm:$0xff]
        %v839 = vld [vmem:[%s750 + $0x40] sm:$0xff]
        %v840 = vld [vmem:[%s750 + $0x48] sm:$0xff]
        %v841 = vld [vmem:[%s750 + $0x50] sm:$0xff]
        %v842 = vld [vmem:[%s750 + $0x58] sm:$0xff]
        %v843 = vld [vmem:[%s754] sm:$0x3f]
        %v845 = vlaneseq
        %v846 = vshrl.u32 %v845, 7
        %v847 = vsub.s32 0, %v846
        %v848 = vrot.slane %v843, %v847
        %v849 = vlaneseq
        %v850 = vshrl.u32 %v849, 7
        %v851 = vsub.s32 1, %v850
        %v852 = vrot.slane %v843, %v851
        %v853 = vlaneseq
        %v854 = vshrl.u32 %v853, 7
        %v855 = vsub.s32 2, %v854
        %v856 = vrot.slane %v843, %v855
        %v857 = vlaneseq
        %v858 = vshrl.u32 %v857, 7
        %v859 = vsub.s32 3, %v858
        %v860 = vrot.slane %v843, %v859
        %v861 = vlaneseq
        %v862 = vshrl.u32 %v861, 7
        %v863 = vsub.s32 4, %v862
        %v864 = vrot.slane %v843, %v863
        %v865 = vlaneseq
        %v866 = vshrl.u32 %v865, 7
        %v867 = vsub.s32 5, %v866
        %v868 = vrot.slane %v843, %v867
        %v887 = vunpack.c.l.b16 %v831
        %v888 = vunpack.c.h.b16 %v831
        %v889 = vunpack.c.l.b16 %v832
        %v890 = vunpack.c.h.b16 %v832
        %v891 = vunpack.c.l.b16 %v833
        %v892 = vunpack.c.h.b16 %v833
        %v893 = vunpack.c.l.b16 %v834
        %v894 = vunpack.c.h.b16 %v834
        %v895 = vunpack.c.l.b16 %v835
        %v896 = vunpack.c.h.b16 %v835
        %v897 = vunpack.c.l.b16 %v836
        %v898 = vunpack.c.h.b16 %v836
        %v899 = vunpack.c.l.b16 %v837
        %v900 = vunpack.c.h.b16 %v837
        %v901 = vunpack.c.l.b16 %v838
        %v902 = vunpack.c.h.b16 %v838
        %v903 = vunpack.c.l.b16 %v839
        %v904 = vunpack.c.h.b16 %v839
        %v905 = vunpack.c.l.b16 %v840
        %v906 = vunpack.c.h.b16 %v840
        %v907 = vunpack.c.l.b16 %v841
        %v908 = vunpack.c.h.b16 %v841
        %v909 = vunpack.c.l.b16 %v842
        %v910 = vunpack.c.h.b16 %v842
        %v911 = vpack.c.b16 %v893, %v887
        %v912 = vpack.c.b16 %v894, %v888
        %v913 = vpack.c.b16 %v895, %v889
        %v914 = vpack.c.b16 %v896, %v890
        %v915 = vpack.c.b16 %v897, %v891
        %v916 = vpack.c.b16 %v898, %v892
        %v917 = vpack.c.b16 %v905, %v899
        %v918 = vpack.c.b16 %v906, %v900
        %v919 = vpack.c.b16 %v907, %v901
        %v920 = vpack.c.b16 %v908, %v902
        %v921 = vpack.c.b16 %v909, %v903
        %v922 = vpack.c.b16 %v910, %v904
        %vm935 = vcmask 261120
        %v937 = vsel %vm935, %v830, 0
        %939 = vmatprep.subr.bf16.mxu0 0
        %940 = vmatpush1.bf16.msra.mxu0 0
        %941 = vmatprep.subr.bf16.mxu0 0
        %942 = vmatpush1.bf16.msra.mxu0 0
        %943 = vmatprep.subr.bf16.mxu0 0
        %944 = vmatpush1.bf16.msra.mxu0 0
        %945 = vmatprep.subr.bf16.mxu0 0
        %946 = vmatpush1.bf16.msra.mxu0 0
        %947 = vmatprep.subr.bf16.mxu0 0
        %948 = vmatpush1.bf16.msra.mxu0 0
        %949 = vmatprep.subr.bf16.mxu0 0
        %950 = vmatpush1.bf16.msra.mxu0 0
        %951 = vmatprep.subr.bf16.mxu0 %v918
        %952 = vmatpush1.bf16.msra.mxu0 %v917
        %953 = vmatprep.subr.bf16.mxu0 %v912
        %954 = vmatpush1.bf16.msra.mxu0 %v911
        %955 = vmatprep.subr.bf16.mxu0 0
        %956 = vmatpush2.bf16.msra.mxu0 0
        %957 = vmatprep.subr.bf16.mxu0 0
        %958 = vmatpush2.bf16.msra.mxu0 0
        %959 = vmatprep.subr.bf16.mxu0 0
        %960 = vmatpush2.bf16.msra.mxu0 0
        %961 = vmatprep.subr.bf16.mxu0 0
        %962 = vmatpush2.bf16.msra.mxu0 0
        %963 = vmatprep.subr.bf16.mxu0 0
        %964 = vmatpush2.bf16.msra.mxu0 0
        %965 = vmatprep.subr.bf16.mxu0 0
        %966 = vmatpush2.bf16.msra.mxu0 0
        %967 = vmatprep.subr.bf16.mxu0 0
        %968 = vmatpush2.bf16.msra.mxu0 0
        %969 = vmatprep.subr.bf16.mxu0 0
        %970 = vmatpush2.bf16.msra.mxu0 0
        %971 = vmatprep.mubr.bf16.mxu0 0
        %972 = vmatmul.mubr.bf16.gmra.mxu0 %v937
        %v973 = vpop.f32.mrf.mxu0
        %v974 = vadd.f32 %v848, %v973
        %v975 = vpop.f32.mrf.mxu0
        %v976 = vadd.f32 %v852, %v975
        %v977 = vpop.f32.mrf.mxu0
        %v978 = vpop.f32.mrf.mxu0
        %979 = vdwg.mxu0
        %980 = vmatprep.subr.bf16.mxu0 0
        %981 = vmatpush1.bf16.msra.mxu0 0
        %982 = vmatprep.subr.bf16.mxu0 0
        %983 = vmatpush1.bf16.msra.mxu0 0
        %984 = vmatprep.subr.bf16.mxu0 0
        %985 = vmatpush1.bf16.msra.mxu0 0
        %986 = vmatprep.subr.bf16.mxu0 0
        %987 = vmatpush1.bf16.msra.mxu0 0
        %988 = vmatprep.subr.bf16.mxu0 0
        %989 = vmatpush1.bf16.msra.mxu0 0
        %990 = vmatprep.subr.bf16.mxu0 0
        %991 = vmatpush1.bf16.msra.mxu0 0
        %992 = vmatprep.subr.bf16.mxu0 %v920
        %993 = vmatpush1.bf16.msra.mxu0 %v919
        %994 = vmatprep.subr.bf16.mxu0 %v914
        %995 = vmatpush1.bf16.msra.mxu0 %v913
        %996 = vmatprep.subr.bf16.mxu0 0
        %997 = vmatpush2.bf16.msra.mxu0 0
        %998 = vmatprep.subr.bf16.mxu0 0
        %999 = vmatpush2.bf16.msra.mxu0 0
        %1000 = vmatprep.subr.bf16.mxu0 0
        %1001 = vmatpush2.bf16.msra.mxu0 0
        %1002 = vmatprep.subr.bf16.mxu0 0
        %1003 = vmatpush2.bf16.msra.mxu0 0
        %1004 = vmatprep.subr.bf16.mxu0 0
        %1005 = vmatpush2.bf16.msra.mxu0 0
        %1006 = vmatprep.subr.bf16.mxu0 0
        %1007 = vmatpush2.bf16.msra.mxu0 0
        %1008 = vmatprep.subr.bf16.mxu0 0
        %1009 = vmatpush2.bf16.msra.mxu0 0
        %1010 = vmatprep.subr.bf16.mxu0 0
        %1011 = vmatpush2.bf16.msra.mxu0 0
        %1012 = vmatprep.mubr.bf16.mxu0 0
        %1013 = vmatmul.mubr.bf16.gmra.mxu0 %v937
        %v1014 = vpop.f32.mrf.mxu0
        %v1015 = vadd.f32 %v856, %v1014
        %v1016 = vpop.f32.mrf.mxu0
        %v1017 = vadd.f32 %v860, %v1016
        %v1018 = vpop.f32.mrf.mxu0
        %v1019 = vpop.f32.mrf.mxu0
        %1020 = vdwg.mxu0
        %1021 = vmatprep.subr.bf16.mxu0 0
        %1022 = vmatpush1.bf16.msra.mxu0 0
        %1023 = vmatprep.subr.bf16.mxu0 0
        %1024 = vmatpush1.bf16.msra.mxu0 0
        %1025 = vmatprep.subr.bf16.mxu0 0
        %1026 = vmatpush1.bf16.msra.mxu0 0
        %1027 = vmatprep.subr.bf16.mxu0 0
        %1028 = vmatpush1.bf16.msra.mxu0 0
        %1029 = vmatprep.subr.bf16.mxu0 0
        %1030 = vmatpush1.bf16.msra.mxu0 0
        %1031 = vmatprep.subr.bf16.mxu0 0
        %1032 = vmatpush1.bf16.msra.mxu0 0
        %1033 = vmatprep.subr.bf16.mxu0 %v922
        %1034 = vmatpush1.bf16.msra.mxu0 %v921
        %1035 = vmatprep.subr.bf16.mxu0 %v916
        %1036 = vmatpush1.bf16.msra.mxu0 %v915
        %1037 = vmatprep.subr.bf16.mxu0 0
        %1038 = vmatpush2.bf16.msra.mxu0 0
        %1039 = vmatprep.subr.bf16.mxu0 0
        %1040 = vmatpush2.bf16.msra.mxu0 0
        %1041 = vmatprep.subr.bf16.mxu0 0
        %1042 = vmatpush2.bf16.msra.mxu0 0
        %1043 = vmatprep.subr.bf16.mxu0 0
        %1044 = vmatpush2.bf16.msra.mxu0 0
        %1045 = vmatprep.subr.bf16.mxu0 0
        %1046 = vmatpush2.bf16.msra.mxu0 0
        %1047 = vmatprep.subr.bf16.mxu0 0
        %1048 = vmatpush2.bf16.msra.mxu0 0
        %1049 = vmatprep.subr.bf16.mxu0 0
        %1050 = vmatpush2.bf16.msra.mxu0 0
        %1051 = vmatprep.subr.bf16.mxu0 0
        %1052 = vmatpush2.bf16.msra.mxu0 0
        %1053 = vmatprep.mubr.bf16.mxu0 0
        %1054 = vmatmul.mubr.bf16.gmra.mxu0 %v937
        %v1055 = vpop.f32.mrf.mxu0
        %v1056 = vadd.f32 %v864, %v1055
        %v1057 = vpop.f32.mrf.mxu0
        %v1058 = vadd.f32 %v868, %v1057
        %v1059 = vpop.f32.mrf.mxu0
        %v1060 = vpop.f32.mrf.mxu0
        %1061 = vdwg.mxu0
        %v1062 = vld [vmem:[%s745] sm:$0x1]
        %v1063 = vld [vmem:[%s759] sm:$0xf]
        %v1064 = vld [vmem:[%s759 + $0x4] sm:$0xf]
        %v1065 = vld [vmem:[%s759 + $0x8] sm:$0xf]
        %v1066 = vld [vmem:[%s759 + $0xc] sm:$0xf]
        %v1067 = vld [vmem:[%s759 + $0x10] sm:$0xf]
        %v1068 = vld [vmem:[%s759 + $0x14] sm:$0xf]
        %v1069 = vld [vmem:[%s759 + $0x18] sm:$0xf]
        %v1070 = vld [vmem:[%s759 + $0x1c] sm:$0xf]
        %v1071 = vld [vmem:[%s759 + $0x20] sm:$0xf]
        %v1072 = vld [vmem:[%s759 + $0x24] sm:$0xf]
        %v1073 = vld [vmem:[%s759 + $0x28] sm:$0xf]
        %v1074 = vld [vmem:[%s759 + $0x2c] sm:$0xf]
        %v1075 = vld [vmem:[%s759 + $0x30] sm:$0xf]
        %v1076 = vld [vmem:[%s759 + $0x34] sm:$0xf]
        %v1077 = vld [vmem:[%s759 + $0x38] sm:$0xf]
        %v1078 = vld [vmem:[%s759 + $0x3c] sm:$0xf]
        %v1079 = vld [vmem:[%s759 + $0x40] sm:$0xf]
        %v1080 = vld [vmem:[%s759 + $0x44] sm:$0xf]
        %v1081 = vld [vmem:[%s759 + $0x48] sm:$0xf]
        %v1082 = vld [vmem:[%s759 + $0x4c] sm:$0xf]
        %v1083 = vld [vmem:[%s759 + $0x50] sm:$0xf]
        %v1084 = vld [vmem:[%s759 + $0x54] sm:$0xf]
        %v1085 = vld [vmem:[%s759 + $0x58] sm:$0xf]
        %v1086 = vld [vmem:[%s759 + $0x5c] sm:$0xf]
        %v1087 = vld [vmem:[%s759 + $0x60] sm:$0xf]
        %v1088 = vld [vmem:[%s759 + $0x64] sm:$0xf]
        %v1089 = vld [vmem:[%s759 + $0x68] sm:$0xf]
        %v1090 = vld [vmem:[%s759 + $0x6c] sm:$0xf]
        %v1091 = vld [vmem:[%s759 + $0x70] sm:$0xf]
        %v1092 = vld [vmem:[%s759 + $0x74] sm:$0xf]
        %v1093 = vld [vmem:[%s759 + $0x78] sm:$0xf]
        %v1094 = vld [vmem:[%s759 + $0x7c] sm:$0xf]
        %v1095 = vpack.c.bf16 %v974, %v974
        %v1096 = vpack.c.bf16 %v1015, %v1015
        %v1098 = vlaneseq
        %v1099 = vshrl.u32 %v1098, 7
        %v1100 = vsub.s32 0, %v1099
        %v1101 = vrot.slane %v1062, %v1100
        %1103 = vmatprep.subr.bf16.mxu0 0
        %1104 = vmatpush1.bf16.xpose.msra.mxu0 0
        %1105 = vmatprep.subr.bf16.mxu0 0
        %1106 = vmatpush1.bf16.xpose.msra.mxu0 0
        %1107 = vmatprep.subr.bf16.mxu0 0
        %1108 = vmatpush1.bf16.xpose.msra.mxu0 0
        %1109 = vmatprep.subr.bf16.mxu0 0
        %1110 = vmatpush1.bf16.xpose.msra.mxu0 0
        %1111 = vmatprep.subr.bf16.mxu0 0
        %1112 = vmatpush1.bf16.xpose.msra.mxu0 0
        %1113 = vmatprep.subr.bf16.mxu0 0
        %1114 = vmatpush1.bf16.xpose.msra.mxu0 0
        %1115 = vmatprep.subr.bf16.mxu0 0
        %1116 = vmatpush1.bf16.xpose.msra.mxu0 0
        %1117 = vmatprep.subr.bf16.mxu0 0
        %1118 = vmatpush1.bf16.xpose.msra.mxu0 %v1096
        %1119 = vmatprep.subr.bf16.mxu0 0
        %1120 = vmatpush2.bf16.xpose.msra.mxu0 0
        %1121 = vmatprep.subr.bf16.mxu0 0
        %1122 = vmatpush2.bf16.xpose.msra.mxu0 0
        %1123 = vmatprep.subr.bf16.mxu0 0
        %1124 = vmatpush2.bf16.xpose.msra.mxu0 0
        %1125 = vmatprep.subr.bf16.mxu0 0
        %1126 = vmatpush2.bf16.xpose.msra.mxu0 0
        %1127 = vmatprep.subr.bf16.mxu0 0
        %1128 = vmatpush2.bf16.xpose.msra.mxu0 0
        %1129 = vmatprep.subr.bf16.mxu0 0
        %1130 = vmatpush2.bf16.xpose.msra.mxu0 0
        %1131 = vmatprep.subr.bf16.mxu0 0
        %1132 = vmatpush2.bf16.xpose.msra.mxu0 0
        %1133 = vmatprep.subr.bf16.mxu0 0
        %1134 = vmatpush2.bf16.xpose.msra.mxu0 0
        %1135 = vmatprep.mubr.bf16.mxu0 0
        %1136 = vmatmul.mubr.bf16.gmra.mxu0 %v1095
        %v1137 = vpop.f32.mrf.mxu0
        %v1138 = vadd.f32 %v1101, %v1137
        %v1139 = vpop.f32.mrf.mxu0
        %v1140 = vpop.f32.mrf.mxu0
        %v1141 = vpop.f32.mrf.mxu0
        %1142 = vdwg.mxu0
        %vm1143 = vcmask 64512
        %v1144 = vsel %vm1143, %v1138, -inf
        %1145 = vmax.xlane.f32.xlu0 %v1144
        %v1146 = vpop.xlane.xlu0 %1145
        %v1147 = vsub.f32 %v1138, %v1146
        %v1148 = vmul.f32 %v1147, 1.442695
        %v1149 = vpow.pop %v1148
        %v1150 = vsel %vm1143, %v1149, 0.0
        %1151 = vadd.xlane.f32.xlu0 %v1150
        %v1152 = vpop.xlane.xlu0 %1151
        %v1153 = vrcp.pop %v1152
        %v1154 = vmul.f32 %v1149, %v1153
        %v1155 = vpack.c.bf16 %v1154, %v1154
        %v1156 = vpack.c.bf16 %v1056, %v1056
        %v1158 = vsel %vm1143, %v1155, 0
        %vm1160 = vcmask 1043456
        %v1162 = vsel %vm1160, %v1156, 0
        %1164 = vmatprep.subr.bf16.mxu0 0
        %1165 = vmatpush1.bf16.msra.mxu0 0
        %1166 = vmatprep.subr.bf16.mxu0 0
        %1167 = vmatpush1.bf16.msra.mxu0 0
        %1168 = vmatprep.subr.bf16.mxu0 0
        %1169 = vmatpush1.bf16.msra.mxu0 0
        %1170 = vmatprep.subr.bf16.mxu0 0
        %1171 = vmatpush1.bf16.msra.mxu0 0
        %1172 = vmatprep.subr.bf16.mxu0 0
        %1173 = vmatpush1.bf16.msra.mxu0 0
        %1174 = vmatprep.subr.bf16.mxu0 0
        %1175 = vmatpush1.bf16.msra.mxu0 0
        %1176 = vmatprep.subr.bf16.mxu0 0
        %1177 = vmatpush1.bf16.msra.mxu0 0
        %1178 = vmatprep.subr.bf16.mxu0 0
        %1179 = vmatpush1.bf16.msra.mxu0 %v1162
        %1180 = vmatprep.subr.bf16.mxu0 0
        %1181 = vmatpush2.bf16.msra.mxu0 0
        %1182 = vmatprep.subr.bf16.mxu0 0
        %1183 = vmatpush2.bf16.msra.mxu0 0
        %1184 = vmatprep.subr.bf16.mxu0 0
        %1185 = vmatpush2.bf16.msra.mxu0 0
        %1186 = vmatprep.subr.bf16.mxu0 0
        %1187 = vmatpush2.bf16.msra.mxu0 0
        %1188 = vmatprep.subr.bf16.mxu0 0
        %1189 = vmatpush2.bf16.msra.mxu0 0
        %1190 = vmatprep.subr.bf16.mxu0 0
        %1191 = vmatpush2.bf16.msra.mxu0 0
        %1192 = vmatprep.subr.bf16.mxu0 0
        %1193 = vmatpush2.bf16.msra.mxu0 0
        %1194 = vmatprep.subr.bf16.mxu0 0
        %1195 = vmatpush2.bf16.msra.mxu0 0
        %1196 = vmatprep.mubr.bf16.mxu0 0
        %1197 = vmatmul.mubr.bf16.gmra.mxu0 %v1158
        %v1198 = vpop.f32.mrf.mxu0
        %v1199 = vadd.f32 0.0, %v1198
        %v1200 = vpop.f32.mrf.mxu0
        %v1201 = vpop.f32.mrf.mxu0
        %v1202 = vpop.f32.mrf.mxu0
        %1203 = vdwg.mxu0
        %v1204 = vpack.c.bf16 %v1199, %v1199
        %v1205 = vpack.c.bf16 %v976, %v976
        %v1206 = vpack.c.bf16 %v1017, %v1017
        %1207 = vmatprep.subr.bf16.mxu0 0
        %1208 = vmatpush1.bf16.xpose.msra.mxu0 0
        %1209 = vmatprep.subr.bf16.mxu0 0
        %1210 = vmatpush1.bf16.xpose.msra.mxu0 0
        %1211 = vmatprep.subr.bf16.mxu0 0
        %1212 = vmatpush1.bf16.xpose.msra.mxu0 0
        %1213 = vmatprep.subr.bf16.mxu0 0
        %1214 = vmatpush1.bf16.xpose.msra.mxu0 0
        %1215 = vmatprep.subr.bf16.mxu0 0
        %1216 = vmatpush1.bf16.xpose.msra.mxu0 0
        %1217 = vmatprep.subr.bf16.mxu0 0
        %1218 = vmatpush1.bf16.xpose.msra.mxu0 0
        %1219 = vmatprep.subr.bf16.mxu0 0
        %1220 = vmatpush1.bf16.xpose.msra.mxu0 0
        %1221 = vmatprep.subr.bf16.mxu0 0
        %1222 = vmatpush1.bf16.xpose.msra.mxu0 %v1206
        %1223 = vmatprep.subr.bf16.mxu0 0
        %1224 = vmatpush2.bf16.xpose.msra.mxu0 0
        %1225 = vmatprep.subr.bf16.mxu0 0
        %1226 = vmatpush2.bf16.xpose.msra.mxu0 0
        %1227 = vmatprep.subr.bf16.mxu0 0
        %1228 = vmatpush2.bf16.xpose.msra.mxu0 0
        %1229 = vmatprep.subr.bf16.mxu0 0
        %1230 = vmatpush2.bf16.xpose.msra.mxu0 0
        %1231 = vmatprep.subr.bf16.mxu0 0
        %1232 = vmatpush2.bf16.xpose.msra.mxu0 0
        %1233 = vmatprep.subr.bf16.mxu0 0
        %1234 = vmatpush2.bf16.xpose.msra.mxu0 0
        %1235 = vmatprep.subr.bf16.mxu0 0
        %1236 = vmatpush2.bf16.xpose.msra.mxu0 0
        %1237 = vmatprep.subr.bf16.mxu0 0
        %1238 = vmatpush2.bf16.xpose.msra.mxu0 0
        %1239 = vmatprep.mubr.bf16.mxu0 0
        %1240 = vmatmul.mubr.bf16.gmra.mxu0 %v1205
        %v1241 = vpop.f32.mrf.mxu0
        %v1242 = vadd.f32 %v1101, %v1241
        %v1243 = vpop.f32.mrf.mxu0
        %v1244 = vpop.f32.mrf.mxu0
        %v1245 = vpop.f32.mrf.mxu0
        %1246 = vdwg.mxu0
        %v1247 = vsel %vm1143, %v1242, -inf
        %1248 = vmax.xlane.f32.xlu0 %v1247
        %v1249 = vpop.xlane.xlu0 %1248
        %v1250 = vsub.f32 %v1242, %v1249
        %v1251 = vmul.f32 %v1250, 1.442695
        %v1252 = vpow.pop %v1251
        %v1253 = vsel %vm1143, %v1252, 0.0
        %1254 = vadd.xlane.f32.xlu0 %v1253
        %v1255 = vpop.xlane.xlu0 %1254
        %v1256 = vrcp.pop %v1255
        %v1257 = vmul.f32 %v1252, %v1256
        %v1258 = vpack.c.bf16 %v1257, %v1257
        %v1259 = vpack.c.bf16 %v1058, %v1058
        %v1261 = vsel %vm1143, %v1258, 0
        %v1264 = vsel %vm1160, %v1259, 0
        %1266 = vmatprep.subr.bf16.mxu0 0
        %1267 = vmatpush1.bf16.msra.mxu0 0
        %1268 = vmatprep.subr.bf16.mxu0 0
        %1269 = vmatpush1.bf16.msra.mxu0 0
        %1270 = vmatprep.subr.bf16.mxu0 0
        %1271 = vmatpush1.bf16.msra.mxu0 0
        %1272 = vmatprep.subr.bf16.mxu0 0
        %1273 = vmatpush1.bf16.msra.mxu0 0
        %1274 = vmatprep.subr.bf16.mxu0 0
        %1275 = vmatpush1.bf16.msra.mxu0 0
        %1276 = vmatprep.subr.bf16.mxu0 0
        %1277 = vmatpush1.bf16.msra.mxu0 0
        %1278 = vmatprep.subr.bf16.mxu0 0
        %1279 = vmatpush1.bf16.msra.mxu0 0
        %1280 = vmatprep.subr.bf16.mxu0 0
        %1281 = vmatpush1.bf16.msra.mxu0 %v1264
        %1282 = vmatprep.subr.bf16.mxu0 0
        %1283 = vmatpush2.bf16.msra.mxu0 0
        %1284 = vmatprep.subr.bf16.mxu0 0
        %1285 = vmatpush2.bf16.msra.mxu0 0
        %1286 = vmatprep.subr.bf16.mxu0 0
        %1287 = vmatpush2.bf16.msra.mxu0 0
        %1288 = vmatprep.subr.bf16.mxu0 0
        %1289 = vmatpush2.bf16.msra.mxu0 0
        %1290 = vmatprep.subr.bf16.mxu0 0
        %1291 = vmatpush2.bf16.msra.mxu0 0
        %1292 = vmatprep.subr.bf16.mxu0 0
        %1293 = vmatpush2.bf16.msra.mxu0 0
        %1294 = vmatprep.subr.bf16.mxu0 0
        %1295 = vmatpush2.bf16.msra.mxu0 0
        %1296 = vmatprep.subr.bf16.mxu0 0
        %1297 = vmatpush2.bf16.msra.mxu0 0
        %1298 = vmatprep.mubr.bf16.mxu0 0
        %1299 = vmatmul.mubr.bf16.gmra.mxu0 %v1261
        %v1300 = vpop.f32.mrf.mxu0
        %v1301 = vadd.f32 0.0, %v1300
        %v1302 = vpop.f32.mrf.mxu0
        %v1303 = vpop.f32.mrf.mxu0
        %v1304 = vpop.f32.mrf.mxu0
        %1305 = vdwg.mxu0
        %v1306 = vpack.c.bf16 %v1301, %v1301
        %v1323 = vunpack.c.l.b16 %v1079
        %v1324 = vunpack.c.l.b16 %v1080
        %v1325 = vunpack.c.l.b16 %v1081
        %v1326 = vunpack.c.l.b16 %v1082
        %v1327 = vunpack.c.l.b16 %v1083
        %v1328 = vunpack.c.l.b16 %v1084
        %v1329 = vunpack.c.l.b16 %v1085
        %v1330 = vunpack.c.l.b16 %v1086
        %v1331 = vunpack.c.l.b16 %v1087
        %v1332 = vunpack.c.l.b16 %v1088
        %v1333 = vunpack.c.l.b16 %v1089
        %v1334 = vunpack.c.l.b16 %v1090
        %v1335 = vunpack.c.l.b16 %v1091
        %v1336 = vunpack.c.l.b16 %v1092
        %v1337 = vunpack.c.l.b16 %v1093
        %v1338 = vunpack.c.l.b16 %v1094
        %v1339 = vpack.c.b16 %v1324, %v1323
        %v1340 = vpack.c.b16 %v1326, %v1325
        %v1341 = vpack.c.b16 %v1328, %v1327
        %v1342 = vpack.c.b16 %v1330, %v1329
        %v1343 = vpack.c.b16 %v1332, %v1331
        %v1344 = vpack.c.b16 %v1334, %v1333
        %v1345 = vpack.c.b16 %v1336, %v1335
        %v1346 = vpack.c.b16 %v1338, %v1337
        %1355 = vmatprep.subr.bf16.mxu0 0
        %1356 = vmatpush1.bf16.msra.mxu0 %v1346
        %1357 = vmatprep.subr.bf16.mxu0 0
        %1358 = vmatpush1.bf16.msra.mxu0 %v1345
        %1359 = vmatprep.subr.bf16.mxu0 0
        %1360 = vmatpush1.bf16.msra.mxu0 %v1344
        %1361 = vmatprep.subr.bf16.mxu0 0
        %1362 = vmatpush1.bf16.msra.mxu0 %v1343
        %1363 = vmatprep.subr.bf16.mxu0 0
        %1364 = vmatpush1.bf16.msra.mxu0 %v1342
        %1365 = vmatprep.subr.bf16.mxu0 0
        %1366 = vmatpush1.bf16.msra.mxu0 %v1341
        %1367 = vmatprep.subr.bf16.mxu0 0
        %1368 = vmatpush1.bf16.msra.mxu0 %v1340
        %1369 = vmatprep.subr.bf16.mxu0 0
        %1370 = vmatpush1.bf16.msra.mxu0 %v1339
        %1371 = vmatprep.subr.bf16.mxu0 0
        %1372 = vmatpush2.bf16.msra.mxu0 0
        %1373 = vmatprep.subr.bf16.mxu0 0
        %1374 = vmatpush2.bf16.msra.mxu0 0
        %1375 = vmatprep.subr.bf16.mxu0 0
        %1376 = vmatpush2.bf16.msra.mxu0 0
        %1377 = vmatprep.subr.bf16.mxu0 0
        %1378 = vmatpush2.bf16.msra.mxu0 0
        %1379 = vmatprep.subr.bf16.mxu0 0
        %1380 = vmatpush2.bf16.msra.mxu0 0
        %1381 = vmatprep.subr.bf16.mxu0 0
        %1382 = vmatpush2.bf16.msra.mxu0 0
        %1383 = vmatprep.subr.bf16.mxu0 0
        %1384 = vmatpush2.bf16.msra.mxu0 0
        %1385 = vmatprep.subr.bf16.mxu0 0
        %1386 = vmatpush2.bf16.msra.mxu0 0
        %1387 = vmatprep.mubr.bf16.mxu0 0
        %1388 = vmatmul.mubr.bf16.gmra.mxu0 %v1306
        %v1389 = vpop.f32.mrf.mxu0
        %v1390 = vadd.f32 0.0, %v1389
        %v1391 = vpop.f32.mrf.mxu0
        %v1392 = vpop.f32.mrf.mxu0
        %v1393 = vpop.f32.mrf.mxu0
        %1394 = vdwg.mxu0
        %v1411 = vunpack.c.l.b16 %v1063
        %v1412 = vunpack.c.l.b16 %v1064
        %v1413 = vunpack.c.l.b16 %v1065
        %v1414 = vunpack.c.l.b16 %v1066
        %v1415 = vunpack.c.l.b16 %v1067
        %v1416 = vunpack.c.l.b16 %v1068
        %v1417 = vunpack.c.l.b16 %v1069
        %v1418 = vunpack.c.l.b16 %v1070
        %v1419 = vunpack.c.l.b16 %v1071
        %v1420 = vunpack.c.l.b16 %v1072
        %v1421 = vunpack.c.l.b16 %v1073
        %v1422 = vunpack.c.l.b16 %v1074
        %v1423 = vunpack.c.l.b16 %v1075
        %v1424 = vunpack.c.l.b16 %v1076
        %v1425 = vunpack.c.l.b16 %v1077
        %v1426 = vunpack.c.l.b16 %v1078
        %v1427 = vpack.c.b16 %v1412, %v1411
        %v1428 = vpack.c.b16 %v1414, %v1413
        %v1429 = vpack.c.b16 %v1416, %v1415
        %v1430 = vpack.c.b16 %v1418, %v1417
        %v1431 = vpack.c.b16 %v1420, %v1419
        %v1432 = vpack.c.b16 %v1422, %v1421
        %v1433 = vpack.c.b16 %v1424, %v1423
        %v1434 = vpack.c.b16 %v1426, %v1425
        %1443 = vmatprep.subr.bf16.mxu0 0
        %1444 = vmatpush1.bf16.msra.mxu0 %v1434
        %1445 = vmatprep.subr.bf16.mxu0 0
        %1446 = vmatpush1.bf16.msra.mxu0 %v1433
        %1447 = vmatprep.subr.bf16.mxu0 0
        %1448 = vmatpush1.bf16.msra.mxu0 %v1432
        %1449 = vmatprep.subr.bf16.mxu0 0
        %1450 = vmatpush1.bf16.msra.mxu0 %v1431
        %1451 = vmatprep.subr.bf16.mxu0 0
        %1452 = vmatpush1.bf16.msra.mxu0 %v1430
        %1453 = vmatprep.subr.bf16.mxu0 0
        %1454 = vmatpush1.bf16.msra.mxu0 %v1429
        %1455 = vmatprep.subr.bf16.mxu0 0
        %1456 = vmatpush1.bf16.msra.mxu0 %v1428
        %1457 = vmatprep.subr.bf16.mxu0 0
        %1458 = vmatpush1.bf16.msra.mxu0 %v1427
        %1459 = vmatprep.subr.bf16.mxu0 0
        %1460 = vmatpush2.bf16.msra.mxu0 0
        %1461 = vmatprep.subr.bf16.mxu0 0
        %1462 = vmatpush2.bf16.msra.mxu0 0
        %1463 = vmatprep.subr.bf16.mxu0 0
        %1464 = vmatpush2.bf16.msra.mxu0 0
        %1465 = vmatprep.subr.bf16.mxu0 0
        %1466 = vmatpush2.bf16.msra.mxu0 0
        %1467 = vmatprep.subr.bf16.mxu0 0
        %1468 = vmatpush2.bf16.msra.mxu0 0
        %1469 = vmatprep.subr.bf16.mxu0 0
        %1470 = vmatpush2.bf16.msra.mxu0 0
        %1471 = vmatprep.subr.bf16.mxu0 0
        %1472 = vmatpush2.bf16.msra.mxu0 0
        %1473 = vmatprep.subr.bf16.mxu0 0
        %1474 = vmatpush2.bf16.msra.mxu0 0
        %1475 = vmatprep.mubr.bf16.mxu0 0
        %1476 = vmatmul.mubr.bf16.gmra.mxu0 %v1204
        %v1477 = vpop.f32.mrf.mxu0
        %v1478 = vadd.f32 %v1390, %v1477
        %v1479 = vpop.f32.mrf.mxu0
        %v1480 = vpop.f32.mrf.mxu0
        %v1481 = vpop.f32.mrf.mxu0
        %1482 = vdwg.mxu0
        %v1483 = vld [vmem:[%s762] sm:$0x1]
        %v1485 = vlaneseq
        %v1486 = vshrl.u32 %v1485, 7
        %v1487 = vsub.s32 0, %v1486
        %v1488 = vrot.slane %v1483, %v1487
        %v1490 = vadd.f32 %v1478, %v1488
        %v1491 = vadd.f32 %v829, %v1490
        %v1492 = vld [vmem:[%s765] sm:$0x1]
        %v1493 = vld [vmem:[%s768] sm:$0x1]
        %v1494 = vsel %vm935, %v1491, 0.0
        %1495 = vadd.xlane.f32.xlu0 %v1494
        %v1496 = vpop.xlane.xlu0 %1495
        %v1497 = vrcp.pop 32.0
        %v1498 = vmul.f32 %v1496, %v1497
        %v1499 = vsub.f32 %v1491, %v1498
        %v1500 = vmul.f32 %v1499, %v1499
        %v1501 = vsel %vm935, %v1500, 0.0
        %1502 = vadd.xlane.f32.xlu0 %v1501
        %v1503 = vpop.xlane.xlu0 %1502
        %v1504 = vmul.f32 %v1503, %v1497
        %v1505 = vadd.f32 %v1504, 1e-12
        %v1506 = vrsqrt.pop %v1505
        %v1507 = vmul.f32 %v1499, %v1506
        %v1509 = vlaneseq
        %v1510 = vshrl.u32 %v1509, 7
        %v1511 = vsub.s32 0, %v1510
        %v1512 = vrot.slane %v1492, %v1511
        %v1514 = vmul.f32 %v1507, %v1512
        %v1516 = vlaneseq
        %v1517 = vshrl.u32 %v1516, 7
        %v1518 = vsub.s32 0, %v1517
        %v1519 = vrot.slane %v1493, %v1518
        %v1521 = vadd.f32 %v1514, %v1519
        %v1522 = vpack.c.bf16 %v1521, %v1521
        %v1523 = vld [vmem:[%s773] sm:$0xf]
        %v1524 = vld [vmem:[%s773 + $0x4] sm:$0xf]
        %v1525 = vld [vmem:[%s773 + $0x8] sm:$0xf]
        %v1526 = vld [vmem:[%s773 + $0xc] sm:$0xf]
        %v1527 = vld [vmem:[%s776] sm:$0x1]
        %v1529 = vlaneseq
        %v1530 = vshrl.u32 %v1529, 7
        %v1531 = vsub.s32 0, %v1530
        %v1532 = vrot.slane %v1527, %v1531
        %v1538 = vunpack.c.l.b16 %v1523
        %v1539 = vunpack.c.l.b16 %v1524
        %v1540 = vunpack.c.l.b16 %v1525
        %v1541 = vunpack.c.l.b16 %v1526
        %v1542 = vpack.c.b16 %v1539, %v1538
        %v1543 = vpack.c.b16 %v1541, %v1540
        %v1547 = vsel %vm935, %v1522, 0
        %1549 = vmatprep.subr.bf16.mxu0 0
        %1550 = vmatpush1.bf16.msra.mxu0 0
        %1551 = vmatprep.subr.bf16.mxu0 0
        %1552 = vmatpush1.bf16.msra.mxu0 0
        %1553 = vmatprep.subr.bf16.mxu0 0
        %1554 = vmatpush1.bf16.msra.mxu0 0
        %1555 = vmatprep.subr.bf16.mxu0 0
        %1556 = vmatpush1.bf16.msra.mxu0 0
        %1557 = vmatprep.subr.bf16.mxu0 0
        %1558 = vmatpush1.bf16.msra.mxu0 0
        %1559 = vmatprep.subr.bf16.mxu0 0
        %1560 = vmatpush1.bf16.msra.mxu0 0
        %1561 = vmatprep.subr.bf16.mxu0 0
        %1562 = vmatpush1.bf16.msra.mxu0 %v1543
        %1563 = vmatprep.subr.bf16.mxu0 0
        %1564 = vmatpush1.bf16.msra.mxu0 %v1542
        %1565 = vmatprep.subr.bf16.mxu0 0
        %1566 = vmatpush2.bf16.msra.mxu0 0
        %1567 = vmatprep.subr.bf16.mxu0 0
        %1568 = vmatpush2.bf16.msra.mxu0 0
        %1569 = vmatprep.subr.bf16.mxu0 0
        %1570 = vmatpush2.bf16.msra.mxu0 0
        %1571 = vmatprep.subr.bf16.mxu0 0
        %1572 = vmatpush2.bf16.msra.mxu0 0
        %1573 = vmatprep.subr.bf16.mxu0 0
        %1574 = vmatpush2.bf16.msra.mxu0 0
        %1575 = vmatprep.subr.bf16.mxu0 0
        %1576 = vmatpush2.bf16.msra.mxu0 0
        %1577 = vmatprep.subr.bf16.mxu0 0
        %1578 = vmatpush2.bf16.msra.mxu0 0
        %1579 = vmatprep.subr.bf16.mxu0 0
        %1580 = vmatpush2.bf16.msra.mxu0 0
        %1581 = vmatprep.mubr.bf16.mxu0 0
        %1582 = vmatmul.mubr.bf16.gmra.mxu0 %v1547
        %v1583 = vpop.f32.mrf.mxu0
        %v1584 = vadd.f32 %v1532, %v1583
        %v1585 = vpop.f32.mrf.mxu0
        %v1586 = vpop.f32.mrf.mxu0
        %v1587 = vpop.f32.mrf.mxu0
        %1588 = vdwg.mxu0
        %v1589 = vmul.f32 %v1584, 0.5
        %v1590 = vmul.f32 %v1584, 0.044715
        %v1591 = vmul.f32 %v1590, %v1584
        %v1592 = vmul.f32 %v1591, %v1584
        %v1593 = vadd.f32 %v1584, %v1592
        %v1594 = vmul.f32 %v1593, 0.7978846
        %v1595 = vtanh.pop %v1594
        %v1596 = vadd.f32 %v1595, 1.0
        %v1597 = vmul.f32 %v1589, %v1596
        %v1598 = vpack.c.bf16 %v1597, %v1597
        %v1599 = vld [vmem:[%s781] sm:$0xf]
        %v1600 = vld [vmem:[%s781 + $0x4] sm:$0xf]
        %v1601 = vld [vmem:[%s781 + $0x8] sm:$0xf]
        %v1602 = vld [vmem:[%s781 + $0xc] sm:$0xf]
        %v1603 = vld [vmem:[%s781 + $0x10] sm:$0xf]
        %v1604 = vld [vmem:[%s781 + $0x14] sm:$0xf]
        %v1605 = vld [vmem:[%s781 + $0x18] sm:$0xf]
        %v1606 = vld [vmem:[%s781 + $0x1c] sm:$0xf]
        %v1607 = vld [vmem:[%s784] sm:$0x1]
        %v1609 = vlaneseq
        %v1610 = vshrl.u32 %v1609, 7
        %v1611 = vsub.s32 0, %v1610
        %v1612 = vrot.slane %v1607, %v1611
        %v1622 = vunpack.c.l.b16 %v1599
        %v1623 = vunpack.c.l.b16 %v1600
        %v1624 = vunpack.c.l.b16 %v1601
        %v1625 = vunpack.c.l.b16 %v1602
        %v1626 = vunpack.c.l.b16 %v1603
        %v1627 = vunpack.c.l.b16 %v1604
        %v1628 = vunpack.c.l.b16 %v1605
        %v1629 = vunpack.c.l.b16 %v1606
        %v1630 = vpack.c.b16 %v1623, %v1622
        %v1631 = vpack.c.b16 %v1625, %v1624
        %v1632 = vpack.c.b16 %v1627, %v1626
        %v1633 = vpack.c.b16 %v1629, %v1628
        %vm1638 = vcmask 523264
        %v1640 = vsel %vm1638, %v1598, 0
        %1642 = vmatprep.subr.bf16.mxu0 0
        %1643 = vmatpush1.bf16.msra.mxu0 0
        %1644 = vmatprep.subr.bf16.mxu0 0
        %1645 = vmatpush1.bf16.msra.mxu0 0
        %1646 = vmatprep.subr.bf16.mxu0 0
        %1647 = vmatpush1.bf16.msra.mxu0 0
        %1648 = vmatprep.subr.bf16.mxu0 0
        %1649 = vmatpush1.bf16.msra.mxu0 0
        %1650 = vmatprep.subr.bf16.mxu0 0
        %1651 = vmatpush1.bf16.msra.mxu0 %v1633
        %1652 = vmatprep.subr.bf16.mxu0 0
        %1653 = vmatpush1.bf16.msra.mxu0 %v1632
        %1654 = vmatprep.subr.bf16.mxu0 0
        %1655 = vmatpush1.bf16.msra.mxu0 %v1631
        %1656 = vmatprep.subr.bf16.mxu0 0
        %1657 = vmatpush1.bf16.msra.mxu0 %v1630
        %1658 = vmatprep.subr.bf16.mxu0 0
        %1659 = vmatpush2.bf16.msra.mxu0 0
        %1660 = vmatprep.subr.bf16.mxu0 0
        %1661 = vmatpush2.bf16.msra.mxu0 0
        %1662 = vmatprep.subr.bf16.mxu0 0
        %1663 = vmatpush2.bf16.msra.mxu0 0
        %1664 = vmatprep.subr.bf16.mxu0 0
        %1665 = vmatpush2.bf16.msra.mxu0 0
        %1666 = vmatprep.subr.bf16.mxu0 0
        %1667 = vmatpush2.bf16.msra.mxu0 0
        %1668 = vmatprep.subr.bf16.mxu0 0
        %1669 = vmatpush2.bf16.msra.mxu0 0
        %1670 = vmatprep.subr.bf16.mxu0 0
        %1671 = vmatpush2.bf16.msra.mxu0 0
        %1672 = vmatprep.subr.bf16.mxu0 0
        %1673 = vmatpush2.bf16.msra.mxu0 0
        %1674 = vmatprep.mubr.bf16.mxu0 0
        %1675 = vmatmul.mubr.bf16.gmra.mxu0 %v1640
        %v1676 = vpop.f32.mrf.mxu0
        %v1677 = vadd.f32 %v1612, %v1676
        %v1678 = vpop.f32.mrf.mxu0
        %v1679 = vpop.f32.mrf.mxu0
        %v1680 = vpop.f32.mrf.mxu0
        %1681 = vdwg.mxu0
        %v1682 = vadd.f32 %v1521, %v1677
        %v1683 = vld [vmem:[%s787] sm:$0x1]
        %v1684 = vld [vmem:[%s790] sm:$0x1]
        %v1685 = vsel %vm935, %v1682, 0.0
        %1686 = vadd.xlane.f32.xlu0 %v1685
        %v1687 = vpop.xlane.xlu0 %1686
        %v1688 = vmul.f32 %v1687, %v1497
        %v1689 = vsub.f32 %v1682, %v1688
        %v1690 = vmul.f32 %v1689, %v1689
        %v1691 = vsel %vm935, %v1690, 0.0
        %1692 = vadd.xlane.f32.xlu0 %v1691
        %v1693 = vpop.xlane.xlu0 %1692
        %v1694 = vmul.f32 %v1693, %v1497
        %v1695 = vadd.f32 %v1694, 1e-12
        %v1696 = vrsqrt.pop %v1695
        %v1697 = vmul.f32 %v1689, %v1696
        %v1699 = vlaneseq
        %v1700 = vshrl.u32 %v1699, 7
        %v1701 = vsub.s32 0, %v1700
        %v1702 = vrot.slane %v1683, %v1701
        %v1704 = vmul.f32 %v1697, %v1702
        %v1706 = vlaneseq
        %v1707 = vshrl.u32 %v1706, 7
        %v1708 = vsub.s32 0, %v1707
        %v1709 = vrot.slane %v1684, %v1708
        %v1711 = vadd.f32 %v1704, %v1709
        %1712 = vst.msk [vmem:[#allocation2] sm:$0xff] %vm935, %v1711
        %p1713 = scmp.eq.s32.totalorder %s37, 1
        // Predicated region
        $region97: #{bert_sentiment_forward.1} parent=91 // pred_check
          %p1714 = pneg %p1713
        $region98: #{bert_sentiment_forward.1} parent=91 // pred_check_branch
          %1716 = sbr.rel (%p1714) target = $region100
        $region99: #{bert_sentiment_forward.1} parent=91 // pred_region
          %v1717 = vpack.c.bf16 %v1711, %v1711
          %v1718 = vld [vmem:[%s16] sm:$0xf]
          %v1719 = vld [vmem:[%s16 + $0x4] sm:$0xf]
          %v1720 = vld [vmem:[%s16 + $0x8] sm:$0xf]
          %v1721 = vld [vmem:[%s16 + $0xc] sm:$0xf]
          %v1722 = vld [vmem:[%s17] sm:$0x1]
          %v1727 = vunpack.c.l.b16 %v1718
          %v1728 = vunpack.c.l.b16 %v1719
          %v1729 = vunpack.c.l.b16 %v1720
          %v1730 = vunpack.c.l.b16 %v1721
          %v1731 = vpack.c.b16 %v1728, %v1727
          %v1732 = vpack.c.b16 %v1730, %v1729
          %v1736 = vsel %vm935, %v1717, 0
          %1738 = vmatprep.subr.bf16.mxu0 0
          %1739 = vmatpush1.bf16.msra.mxu0 0
          %1740 = vmatprep.subr.bf16.mxu0 0
          %1741 = vmatpush1.bf16.msra.mxu0 0
          %1742 = vmatprep.subr.bf16.mxu0 0
          %1743 = vmatpush1.bf16.msra.mxu0 0
          %1744 = vmatprep.subr.bf16.mxu0 0
          %1745 = vmatpush1.bf16.msra.mxu0 0
          %1746 = vmatprep.subr.bf16.mxu0 0
          %1747 = vmatpush1.bf16.msra.mxu0 0
          %1748 = vmatprep.subr.bf16.mxu0 0
          %1749 = vmatpush1.bf16.msra.mxu0 0
          %1750 = vmatprep.subr.bf16.mxu0 0
          %1751 = vmatpush1.bf16.msra.mxu0 %v1732
          %1752 = vmatprep.subr.bf16.mxu0 0
          %1753 = vmatpush1.bf16.msra.mxu0 %v1731
          %1754 = vmatprep.subr.bf16.mxu0 0
          %1755 = vmatpush2.bf16.msra.mxu0 0
          %1756 = vmatprep.subr.bf16.mxu0 0
          %1757 = vmatpush2.bf16.msra.mxu0 0
          %1758 = vmatprep.subr.bf16.mxu0 0
          %1759 = vmatpush2.bf16.msra.mxu0 0
          %1760 = vmatprep.subr.bf16.mxu0 0
          %1761 = vmatpush2.bf16.msra.mxu0 0
          %1762 = vmatprep.subr.bf16.mxu0 0
          %1763 = vmatpush2.bf16.msra.mxu0 0
          %1764 = vmatprep.subr.bf16.mxu0 0
          %1765 = vmatpush2.bf16.msra.mxu0 0
          %1766 = vmatprep.subr.bf16.mxu0 0
          %1767 = vmatpush2.bf16.msra.mxu0 0
          %1768 = vmatprep.subr.bf16.mxu0 0
          %1769 = vmatpush2.bf16.msra.mxu0 0
          %1770 = vmatprep.mubr.bf16.mxu0 0
          %1771 = vmatmul.mubr.bf16.gmra.mxu0 %v1736
          %v1772 = vpop.f32.mrf.mxu0
          %v1773 = vadd.f32 %v1722, %v1772
          %v1774 = vpop.f32.mrf.mxu0
          %v1775 = vpop.f32.mrf.mxu0
          %v1776 = vpop.f32.mrf.mxu0
          %1777 = vdwg.mxu0
          %1778 = vst [vmem:[%s738] sm:$0x1] %v1773
        $region100: #{bert_sentiment_forward.1} parent=91 // pred_fallthru
          _
        %s1779 = sand.u32 %s500, 1
        %s1780 = scalar_lea.sflag [#allocation4], %s1779
        %s1781 = sand.u32 %s500, 1
        %s1782 = scalar_lea.vmem [#allocation3], %s1781
        // Predicated region
        $region101: #{bert_sentiment_forward.1} parent=91 // pred_check
          %p1783 = pneg %p510
        $region102: #{bert_sentiment_forward.1} parent=91 // pred_check_branch
          %1785 = sbr.rel (%p1783) target = $region104
        $region103: #{bert_sentiment_forward.1} parent=91 // pred_region
          %s1787 = ssub.s32 16, 16
          %1788 = vsyncadd %s1780, %s1787
          %s1789 = smul.addr %s36, 16
          %s1790 = scalar_lea.hbm %s18, %s1789
          %s1792 = sshll.u32 %s1782, 4
          %s1793 = int_to_ptr.vmem [resolvable:$true] %s1792
          %1795 = dma.vmem_to_hbm [thread:$0]  %s1793, 16, %s1790, %s1780
        $region104: #{bert_sentiment_forward.1} parent=91 // pred_fallthru
          _
      $region92: #{bert_sentiment_forward.1} parent=5 // pred_fallthru
        _
      %p1796 = scmp.le.s32.totalorder 2, %s27
      // Predicated region
      $region105: #{bert_sentiment_forward.1} parent=5 // pred_check
        %p1797 = pneg %p1796
      $region106: #{bert_sentiment_forward.1} parent=5 // pred_check_branch
        %1799 = sbr.rel (%p1797) target = $region108
      $region107: #{bert_sentiment_forward.1} parent=5 // pred_region
        %s1800 = ssub.s32 %s27, 2
        // Predicated region
        $region109: #{bert_sentiment_forward.1} parent=107 // pred_check
          %p1801 = pneg %p516
        $region110: #{bert_sentiment_forward.1} parent=107 // pred_check_branch
          %1803 = sbr.rel (%p1801) target = $region112
        $region111: #{bert_sentiment_forward.1} parent=107 // pred_region
          %s1804 = sand.u32 %s501, 1
          %s1805 = scalar_lea.sflag [#allocation4], %s1804
          %s1806 = sand.u32 %s501, 1
          %s1807 = scalar_lea.vmem [#allocation3], %s1806
          %1808 = dma.done %s1805, 16
        $region112: #{bert_sentiment_forward.1} parent=107 // pred_fallthru
          _
      $region108: #{bert_sentiment_forward.1} parent=5 // pred_fallthru
        _
    $region6: #{bert_sentiment_forward.1} parent=1 // loop_footer
      %s31 = sadd.s32 1, %s27
    $region7: #{bert_sentiment_forward.1} parent=1 // loop_footer_branch
      %26 = sbr.rel target = $region3
    $region8: #{bert_sentiment_forward.1} parent=1 // loop_exit
      _
    %1809 = vsyncpa [#allocation4], 1
    %s1810 = scalar_lea.sflag [#allocation4], 1
    %1811 = vsyncpa %s1810, 1

</llo_original>
